<compile_context>
chip_gen: v6e
topology: v6e:2x2x1
jax: 0.10.0
libtpu: 0.0.40
codegen_flags: <defaults>
</compile_context>

<pallas_src>
import functools

import jax
import jax.numpy as jnp
import numpy as np
from jax.experimental import pallas as pl
from jax.experimental.pallas import tpu as pltpu


def _block_kernel(xpad_ref, xres_ref, w1_ref, g1_ref, b1_ref,
                  w2_ref, g2_ref, b2_ref, amat_ref, o_ref,
                  *, H, W, Cin, C, eps):
    """One batch sample per grid step:
       conv3x3 -> GN -> ReLU -> conv3x3 -> GN -> + identity residual -> ReLU.

    xpad_ref : (H+2, W+2, Cin) bf16  zero-padded NHWC sample (conv1 input)
    xres_ref : (H*W, C)        f32   unpadded sample (identity residual)
    w1_ref   : (3, 3*Cin, C)   bf16  conv1 weights, w1_ref[dx][dy*Cin+ci, co]
    w2_ref   : (3, 3*C,  C)    bf16  conv2 weights, same layout
    g*/b*    : (1, C)          f32   GroupNorm affine parameters
    amat_ref : (C, C)          f32   group-averaging matrix: 1/(Cg*H*W) iff
                                     channels i, j share a group
    o_ref    : (H*W, C)        f32   output sample
    """
    HW = H * W

    def conv3x3(slab_fn, w_ref, cin):
        # out[h*W+w, co] = sum_dx xs_dx[h*W+w, :] @ w_ref[dx]
        # with xs_dx[h*W+w, dy*cin+ci] = slab_dx[h+dy, w, ci]  (K = 3*cin).
        acc = jnp.zeros((HW, C), jnp.float32)
        for dx in range(3):
            slab = slab_fn(dx)                                  # (H+2, W, cin) bf16
            xs = jnp.concatenate(                               # dy slices are free
                [slab[0:H], slab[1:H + 1], slab[2:H + 2]], axis=-1)
            xs = xs.reshape(HW, 3 * cin)                        # layout-preserving
            acc = acc + jnp.dot(xs, w_ref[dx],
                                preferred_element_type=jnp.float32)
        return acc                                              # (HW, C) f32

    def group_norm(y, g_ref, b_ref):
        # y: (HW, C) f32.  Biased variance over (spatial x group channels),
        # matching PyTorch GroupNorm; mean and E[x^2] from one small matmul.
        s = jnp.sum(y, axis=0, keepdims=True)                   # (1, C)
        s2 = jnp.sum(y * y, axis=0, keepdims=True)              # (1, C)
        stats = jnp.dot(jnp.concatenate([s, s2], axis=0), amat_ref[...],
                        preferred_element_type=jnp.float32)     # (2, C)
        mean = stats[0:1, :]
        var = jnp.maximum(stats[1:2, :] - mean * mean, 0.0)     # clamp >= 0
        inv = jax.lax.rsqrt(var + eps)
        return (y - mean) * inv * g_ref[...] + b_ref[...]

    # ---- conv1 (input pre-padded by the wrapper) -> gn1 -> relu ----
    out1 = conv3x3(lambda dx: xpad_ref[:, dx:dx + W, :], w1_ref, Cin)
    h1 = jnp.maximum(group_norm(out1, g1_ref, b1_ref), 0.0)

    # ---- conv2 taps from the unpadded intermediate (no full zero-fill) ----
    h1 = h1.reshape(H, W, C).astype(jnp.bfloat16)
    zrow = jnp.zeros((1, W, C), jnp.bfloat16)
    hext = jnp.concatenate([zrow, h1, zrow], axis=0)            # (H+2, W, C)
    zcol = jnp.zeros((H + 2, 1, C), jnp.bfloat16)

    def h_slab(dx):
        if dx == 0:      # columns shifted right by one, zero column at w = 0
            return jnp.concatenate([zcol, hext[:, :W - 1, :]], axis=1)
        if dx == 1:      # center tap: no shift, no copy
            return hext
        return jnp.concatenate([hext[:, 1:, :], zcol], axis=1)

    out2 = group_norm(conv3x3(h_slab, w2_ref, C), g2_ref, b2_ref)

    # ---- identity residual (aligned unpadded input, f32) + relu ----
    # NOTE: with C < 128 the output store is lane-masked; irrelevant for
    # planes >= 128 (typical deeper ResNet stages).
    o_ref[...] = jnp.maximum(out2 + xres_ref[...], 0.0).astype(o_ref.dtype)


def basic_block_groupnorm(x_nchw, w1, g1, b1, w2, g2, b2,
                          num_groups=32, eps=1e-5):
    """x_nchw: (N, Cin, H, W) f32.  w1: (3,3,Cin,C), w2: (3,3,C,C) HWIO."""
    N, Cin, H, W = x_nchw.shape
    C = w1.shape[-1]
    assert Cin == C, "identity residual requires inplanes == planes, stride=1"
    assert C % num_groups == 0
    Cg = C // num_groups

    # Layout glue (XLA): NCHW -> NHWC, conv1 halo padding, bf16 weights with
    # taps pre-concatenated along K: wcat[dx][dy*Cin+ci, co] = w[dy, dx, ci, co].
    x = jnp.transpose(x_nchw, (0, 2, 3, 1))                     # NHWC f32
    xpad = jnp.pad(x, ((0, 0), (1, 1), (1, 1), (0, 0))).astype(jnp.bfloat16)
    xres = x.reshape(N, H * W, C)                               # f32 residual
    w1cat = jnp.transpose(w1, (1, 0, 2, 3)).reshape(3, 3 * Cin, C).astype(jnp.bfloat16)
    w2cat = jnp.transpose(w2, (1, 0, 2, 3)).reshape(3, 3 * C, C).astype(jnp.bfloat16)

    gidx = jnp.arange(C) // Cg
    amat = (gidx[:, None] == gidx[None, :]).astype(jnp.float32) / (Cg * H * W)

    kernel = functools.partial(_block_kernel, H=H, W=W, Cin=Cin, C=C, eps=eps)

    out = pl.pallas_call(
        kernel,
        out_shape=jax.ShapeDtypeStruct((N, H * W, C), x.dtype),
        grid=(N,),
        in_specs=[
            pl.BlockSpec((None, H + 2, W + 2, Cin), lambda n: (n, 0, 0, 0)),
            pl.BlockSpec((None, H * W, C), lambda n: (n, 0, 0)),
            pl.BlockSpec((3, 3 * Cin, C), lambda n: (0, 0, 0)),
            pl.BlockSpec((1, C), lambda n: (0, 0)),
            pl.BlockSpec((1, C), lambda n: (0, 0)),
            pl.BlockSpec((3, 3 * C, C), lambda n: (0, 0, 0)),
            pl.BlockSpec((1, C), lambda n: (0, 0)),
            pl.BlockSpec((1, C), lambda n: (0, 0)),
            pl.BlockSpec((C, C), lambda n: (0, 0)),
        ],
        out_specs=pl.BlockSpec((None, H * W, C), lambda n: (n, 0, 0)),
        compiler_params=pltpu.CompilerParams(
            dimension_semantics=("parallel",),
            vmem_limit_bytes=32 * 1024 * 1024),
    )(xpad, xres, w1cat, g1.reshape(1, C), b1.reshape(1, C),
      w2cat, g2.reshape(1, C), b2.reshape(1, C), amat)

    # TODO(synk): for very large per-sample H*W, additionally tile H into
    # row-strips with a 1-row halo (overlapping index_map); GN stats would then
    # need a two-pass (stats, normalize) grid.
    return jnp.transpose(out.reshape(N, H, W, C), (0, 3, 1, 2))   # back to NCHW


def _reference(x_nchw, w1, g1, b1, w2, g2, b2, num_groups=32, eps=1e-5,
               conv_dtype=jnp.float32):
    """Plain-JAX reference of the PyTorch forward.  conv_dtype=bfloat16 models
    the kernel's bf16-input MXU matmuls (f32 accumulation) exactly."""
    x = jnp.transpose(x_nchw, (0, 2, 3, 1)).astype(jnp.float32)

    def conv(y, w):
        return jax.lax.conv_general_dilated(
            y.astype(conv_dtype), w.astype(conv_dtype), (1, 1), 'SAME',
            dimension_numbers=('NHWC', 'HWIO', 'NHWC'),
            preferred_element_type=jnp.float32)

    def gn(y, g, b):
        n, h, w_, c = y.shape
        cg = c // num_groups
        yg = y.reshape(n, h * w_, num_groups, cg)
        m = yg.mean(axis=(1, 3), keepdims=True)
        v = ((yg - m) ** 2).mean(axis=(1, 3), keepdims=True)
        yn = ((yg - m) * jax.lax.rsqrt(v + eps)).reshape(n, h, w_, c)
        return yn * g + b

    out = jax.nn.relu(gn(conv(x, w1), g1, b1))
    out = gn(conv(out, w2), g2, b2)
    out = jax.nn.relu(out + x)
    return jnp.transpose(out, (0, 3, 1, 2))


if __name__ == "__main__":
    # GroupNorm(32, planes) requires planes % 32 == 0; identity residual
    # requires inplanes == planes and stride == 1.
    N, C, H, W = 2, 64, 8, 8

    key = jax.random.PRNGKey(0)
    k = jax.random.split(key, 7)
    std = float(np.sqrt(2.0 / (9 * C)))  # kaiming-like
    x = jax.random.normal(k[0], (N, C, H, W), jnp.float32)
    w1 = jax.random.normal(k[1], (3, 3, C, C), jnp.float32) * std
    w2 = jax.random.normal(k[2], (3, 3, C, C), jnp.float32) * std
    g1 = 1.0 + 0.1 * jax.random.normal(k[3], (C,), jnp.float32)
    b1 = 0.1 * jax.random.normal(k[4], (C,), jnp.float32)
    g2 = 1.0 + 0.1 * jax.random.normal(k[5], (C,), jnp.float32)
    b2 = 0.1 * jax.random.normal(k[6], (C,), jnp.float32)

    out = jax.block_until_ready(basic_block_groupnorm(x, w1, g1, b1, w2, g2, b2))
    assert out.shape == (N, C, H, W)

    # Tight check against a reference that models the kernel's bf16-input /
    # f32-accumulate convolutions (proves the fused structure is exact).
    ref_bf16 = jax.block_until_ready(
        _reference(x, w1, g1, b1, w2, g2, b2, conv_dtype=jnp.bfloat16))
    np.testing.assert_allclose(np.asarray(out), np.asarray(ref_bf16),
                               rtol=5e-3, atol=5e-3)

    # Looser check against the pure-f32 PyTorch-semantics reference (bounds the
    # precision cost of the bf16 MXU-input optimization).
    ref_f32 = jax.block_until_ready(_reference(x, w1, g1, b1, w2, g2, b2))
    np.testing.assert_allclose(np.asarray(out), np.asarray(ref_f32),
                               rtol=2e-2, atol=5e-2)

    print("KERNEL_OK")
</pallas_src>

<mosaic_0001>
module attributes {stable_mosaic.version = 11 : i64} {
  func.func @_block_kernel(%arg0: i32, %arg1: memref<1x10x10x64xbf16, #tpu.memory_space<vmem>>, %arg2: memref<1x64x64xf32, #tpu.memory_space<vmem>>, %arg3: memref<3x192x64xbf16, #tpu.memory_space<vmem>>, %arg4: memref<1x64xf32, #tpu.memory_space<vmem>>, %arg5: memref<1x64xf32, #tpu.memory_space<vmem>>, %arg6: memref<3x192x64xbf16, #tpu.memory_space<vmem>>, %arg7: memref<1x64xf32, #tpu.memory_space<vmem>>, %arg8: memref<1x64xf32, #tpu.memory_space<vmem>>, %arg9: memref<64x64xf32, #tpu.memory_space<vmem>>, %arg10: memref<1x64x64xf32, #tpu.memory_space<vmem>>) attributes {dimension_semantics = [#tpu.dimension_semantics<parallel>], iteration_bounds = array<i64: 2>, scalar_prefetch = 0 : i64, scratch_operands = 0 : i64, tpu.core_type = #tpu.core_type<tc>, window_params = [{transform_indices = @transform_0, window_bounds = array<i64: 1, 10, 10, 64>}, {transform_indices = @transform_1, window_bounds = array<i64: 1, 64, 64>}, {pipeline_mode = #tpu.pipeline_mode<synchronous>, transform_indices = @transform_2, window_bounds = array<i64: 3, 192, 64>}, {pipeline_mode = #tpu.pipeline_mode<synchronous>, transform_indices = @transform_3, window_bounds = array<i64: 1, 64>}, {pipeline_mode = #tpu.pipeline_mode<synchronous>, transform_indices = @transform_4, window_bounds = array<i64: 1, 64>}, {pipeline_mode = #tpu.pipeline_mode<synchronous>, transform_indices = @transform_5, window_bounds = array<i64: 3, 192, 64>}, {pipeline_mode = #tpu.pipeline_mode<synchronous>, transform_indices = @transform_6, window_bounds = array<i64: 1, 64>}, {pipeline_mode = #tpu.pipeline_mode<synchronous>, transform_indices = @transform_7, window_bounds = array<i64: 1, 64>}, {pipeline_mode = #tpu.pipeline_mode<synchronous>, transform_indices = @transform_8, window_bounds = array<i64: 64, 64>}, {transform_indices = @transform_9, window_bounds = array<i64: 1, 64, 64>}]} {
    %cst = arith.constant 0.000000e+00 : f32
    %0 = vector.broadcast %cst : f32 to vector<64x64xf32>
    %c0 = arith.constant 0 : index
    %c0_0 = arith.constant 0 : index
    %c0_1 = arith.constant 0 : index
    %c0_2 = arith.constant 0 : index
    %1 = vector.load %arg1[%c0, %c0_0, %c0_1, %c0_2] : memref<1x10x10x64xbf16, #tpu.memory_space<vmem>>, vector<1x10x8x64xbf16>
    %2 = vector.shape_cast %1 : vector<1x10x8x64xbf16> to vector<10x8x64xbf16>
    %3 = vector.extract_strided_slice %2 {offsets = [0, 0, 0], sizes = [8, 8, 64], strides = [1, 1, 1]} : vector<10x8x64xbf16> to vector<8x8x64xbf16>
    %4 = vector.extract_strided_slice %2 {offsets = [1, 0, 0], sizes = [8, 8, 64], strides = [1, 1, 1]} : vector<10x8x64xbf16> to vector<8x8x64xbf16>
    %5 = vector.extract_strided_slice %2 {offsets = [2, 0, 0], sizes = [8, 8, 64], strides = [1, 1, 1]} : vector<10x8x64xbf16> to vector<8x8x64xbf16>
    %6 = tpu.concatenate %3, %4, %5 in 2 : vector<8x8x64xbf16>, vector<8x8x64xbf16>, vector<8x8x64xbf16> -> vector<8x8x192xbf16>
    %7 = vector.shape_cast %6 : vector<8x8x192xbf16> to vector<64x192xbf16>
    %c0_3 = arith.constant 0 : index
    %c0_4 = arith.constant 0 : index
    %c0_5 = arith.constant 0 : index
    %8 = vector.load %arg3[%c0_3, %c0_4, %c0_5] : memref<3x192x64xbf16, #tpu.memory_space<vmem>>, vector<1x192x64xbf16>
    %9 = vector.shape_cast %8 : vector<1x192x64xbf16> to vector<192x64xbf16>
    %cst_6 = arith.constant dense<0.000000e+00> : vector<64x64xf32>
    %10 = tpu.matmul %7, %9, %cst_6 {dimension_numbers = #tpu.dot_dimension_numbers<[1], [0], [0], [1], [0, 0, 1, 1], [], []>} : vector<64x192xbf16>, vector<192x64xbf16>, vector<64x64xf32> -> vector<64x64xf32>
    %11 = arith.addf %0, %10 : vector<64x64xf32>
    %c0_7 = arith.constant 0 : index
    %c0_8 = arith.constant 0 : index
    %c1 = arith.constant 1 : index
    %c0_9 = arith.constant 0 : index
    %12 = vector.load %arg1[%c0_7, %c0_8, %c1, %c0_9] : memref<1x10x10x64xbf16, #tpu.memory_space<vmem>>, vector<1x10x8x64xbf16>
    %13 = vector.shape_cast %12 : vector<1x10x8x64xbf16> to vector<10x8x64xbf16>
    %14 = vector.extract_strided_slice %13 {offsets = [0, 0, 0], sizes = [8, 8, 64], strides = [1, 1, 1]} : vector<10x8x64xbf16> to vector<8x8x64xbf16>
    %15 = vector.extract_strided_slice %13 {offsets = [1, 0, 0], sizes = [8, 8, 64], strides = [1, 1, 1]} : vector<10x8x64xbf16> to vector<8x8x64xbf16>
    %16 = vector.extract_strided_slice %13 {offsets = [2, 0, 0], sizes = [8, 8, 64], strides = [1, 1, 1]} : vector<10x8x64xbf16> to vector<8x8x64xbf16>
    %17 = tpu.concatenate %14, %15, %16 in 2 : vector<8x8x64xbf16>, vector<8x8x64xbf16>, vector<8x8x64xbf16> -> vector<8x8x192xbf16>
    %18 = vector.shape_cast %17 : vector<8x8x192xbf16> to vector<64x192xbf16>
    %c1_10 = arith.constant 1 : index
    %c0_11 = arith.constant 0 : index
    %c0_12 = arith.constant 0 : index
    %19 = vector.load %arg3[%c1_10, %c0_11, %c0_12] : memref<3x192x64xbf16, #tpu.memory_space<vmem>>, vector<1x192x64xbf16>
    %20 = vector.shape_cast %19 : vector<1x192x64xbf16> to vector<192x64xbf16>
    %cst_13 = arith.constant dense<0.000000e+00> : vector<64x64xf32>
    %21 = tpu.matmul %18, %20, %cst_13 {dimension_numbers = #tpu.dot_dimension_numbers<[1], [0], [0], [1], [0, 0, 1, 1], [], []>} : vector<64x192xbf16>, vector<192x64xbf16>, vector<64x64xf32> -> vector<64x64xf32>
    %22 = arith.addf %11, %21 : vector<64x64xf32>
    %c0_14 = arith.constant 0 : index
    %c0_15 = arith.constant 0 : index
    %c2 = arith.constant 2 : index
    %c0_16 = arith.constant 0 : index
    %23 = vector.load %arg1[%c0_14, %c0_15, %c2, %c0_16] : memref<1x10x10x64xbf16, #tpu.memory_space<vmem>>, vector<1x10x8x64xbf16>
    %24 = vector.shape_cast %23 : vector<1x10x8x64xbf16> to vector<10x8x64xbf16>
    %25 = vector.extract_strided_slice %24 {offsets = [0, 0, 0], sizes = [8, 8, 64], strides = [1, 1, 1]} : vector<10x8x64xbf16> to vector<8x8x64xbf16>
    %26 = vector.extract_strided_slice %24 {offsets = [1, 0, 0], sizes = [8, 8, 64], strides = [1, 1, 1]} : vector<10x8x64xbf16> to vector<8x8x64xbf16>
    %27 = vector.extract_strided_slice %24 {offsets = [2, 0, 0], sizes = [8, 8, 64], strides = [1, 1, 1]} : vector<10x8x64xbf16> to vector<8x8x64xbf16>
    %28 = tpu.concatenate %25, %26, %27 in 2 : vector<8x8x64xbf16>, vector<8x8x64xbf16>, vector<8x8x64xbf16> -> vector<8x8x192xbf16>
    %29 = vector.shape_cast %28 : vector<8x8x192xbf16> to vector<64x192xbf16>
    %c2_17 = arith.constant 2 : index
    %c0_18 = arith.constant 0 : index
    %c0_19 = arith.constant 0 : index
    %30 = vector.load %arg3[%c2_17, %c0_18, %c0_19] : memref<3x192x64xbf16, #tpu.memory_space<vmem>>, vector<1x192x64xbf16>
    %31 = vector.shape_cast %30 : vector<1x192x64xbf16> to vector<192x64xbf16>
    %cst_20 = arith.constant dense<0.000000e+00> : vector<64x64xf32>
    %32 = tpu.matmul %29, %31, %cst_20 {dimension_numbers = #tpu.dot_dimension_numbers<[1], [0], [0], [1], [0, 0, 1, 1], [], []>} : vector<64x192xbf16>, vector<192x64xbf16>, vector<64x64xf32> -> vector<64x64xf32>
    %33 = arith.addf %22, %32 : vector<64x64xf32>
    %cst_21 = arith.constant dense<0.000000e+00> : vector<64xf32>
    %34 = vector.multi_reduction <add>, %33, %cst_21 [0] : vector<64x64xf32> to vector<64xf32>
    %35 = vector.shape_cast %34 : vector<64xf32> to vector<1x64xf32>
    %36 = arith.mulf %33, %33 : vector<64x64xf32>
    %cst_22 = arith.constant dense<0.000000e+00> : vector<64xf32>
    %37 = vector.multi_reduction <add>, %36, %cst_22 [0] : vector<64x64xf32> to vector<64xf32>
    %38 = vector.shape_cast %37 : vector<64xf32> to vector<1x64xf32>
    %39 = tpu.concatenate %35, %38 in 0 : vector<1x64xf32>, vector<1x64xf32> -> vector<2x64xf32>
    %c0_23 = arith.constant 0 : index
    %c0_24 = arith.constant 0 : index
    %40 = vector.load %arg9[%c0_23, %c0_24] : memref<64x64xf32, #tpu.memory_space<vmem>>, vector<64x64xf32>
    %cst_25 = arith.constant dense<0.000000e+00> : vector<2x64xf32>
    %41 = tpu.matmul %39, %40, %cst_25 {dimension_numbers = #tpu.dot_dimension_numbers<[1], [0], [0], [1], [0, 0, 1, 1], [], []>} : vector<2x64xf32>, vector<64x64xf32>, vector<2x64xf32> -> vector<2x64xf32>
    %42 = vector.extract_strided_slice %41 {offsets = [0, 0], sizes = [1, 64], strides = [1, 1]} : vector<2x64xf32> to vector<1x64xf32>
    %43 = vector.extract_strided_slice %41 {offsets = [1, 0], sizes = [1, 64], strides = [1, 1]} : vector<2x64xf32> to vector<1x64xf32>
    %44 = arith.mulf %42, %42 : vector<1x64xf32>
    %45 = arith.subf %43, %44 : vector<1x64xf32>
    %cst_26 = arith.constant 0.000000e+00 : f32
    %46 = vector.broadcast %cst_26 : f32 to vector<1x64xf32>
    %47 = arith.maximumf %45, %46 : vector<1x64xf32>
    %cst_27 = arith.constant 9.99999974E-6 : f32
    %48 = vector.broadcast %cst_27 : f32 to vector<1x64xf32>
    %49 = arith.addf %47, %48 : vector<1x64xf32>
    %50 = math.rsqrt %49 : vector<1x64xf32>
    %51 = vector.broadcast %42 : vector<1x64xf32> to vector<64x64xf32>
    %52 = arith.subf %33, %51 : vector<64x64xf32>
    %53 = vector.broadcast %50 : vector<1x64xf32> to vector<64x64xf32>
    %54 = arith.mulf %52, %53 : vector<64x64xf32>
    %c0_28 = arith.constant 0 : index
    %c0_29 = arith.constant 0 : index
    %55 = vector.load %arg4[%c0_28, %c0_29] : memref<1x64xf32, #tpu.memory_space<vmem>>, vector<1x64xf32>
    %56 = vector.broadcast %55 : vector<1x64xf32> to vector<64x64xf32>
    %57 = arith.mulf %54, %56 : vector<64x64xf32>
    %c0_30 = arith.constant 0 : index
    %c0_31 = arith.constant 0 : index
    %58 = vector.load %arg5[%c0_30, %c0_31] : memref<1x64xf32, #tpu.memory_space<vmem>>, vector<1x64xf32>
    %59 = vector.broadcast %58 : vector<1x64xf32> to vector<64x64xf32>
    %60 = arith.addf %57, %59 : vector<64x64xf32>
    %cst_32 = arith.constant 0.000000e+00 : f32
    %61 = vector.broadcast %cst_32 : f32 to vector<64x64xf32>
    %62 = arith.maximumf %60, %61 : vector<64x64xf32>
    %63 = vector.shape_cast %62 : vector<64x64xf32> to vector<8x8x64xf32>
    %64 = arith.truncf %63 : vector<8x8x64xf32> to vector<8x8x64xbf16>
    %cst_33 = arith.constant 0.000000e+00 : bf16
    %65 = vector.broadcast %cst_33 : bf16 to vector<1x8x64xbf16>
    %66 = tpu.concatenate %65, %64, %65 in 0 : vector<1x8x64xbf16>, vector<8x8x64xbf16>, vector<1x8x64xbf16> -> vector<10x8x64xbf16>
    %cst_34 = arith.constant 0.000000e+00 : bf16
    %67 = vector.broadcast %cst_34 : bf16 to vector<10x1x64xbf16>
    %cst_35 = arith.constant 0.000000e+00 : f32
    %68 = vector.broadcast %cst_35 : f32 to vector<64x64xf32>
    %69 = vector.extract_strided_slice %66 {offsets = [0, 0, 0], sizes = [10, 7, 64], strides = [1, 1, 1]} : vector<10x8x64xbf16> to vector<10x7x64xbf16>
    %70 = tpu.concatenate %67, %69 in 1 : vector<10x1x64xbf16>, vector<10x7x64xbf16> -> vector<10x8x64xbf16>
    %71 = vector.extract_strided_slice %70 {offsets = [0, 0, 0], sizes = [8, 8, 64], strides = [1, 1, 1]} : vector<10x8x64xbf16> to vector<8x8x64xbf16>
    %72 = vector.extract_strided_slice %70 {offsets = [1, 0, 0], sizes = [8, 8, 64], strides = [1, 1, 1]} : vector<10x8x64xbf16> to vector<8x8x64xbf16>
    %73 = vector.extract_strided_slice %70 {offsets = [2, 0, 0], sizes = [8, 8, 64], strides = [1, 1, 1]} : vector<10x8x64xbf16> to vector<8x8x64xbf16>
    %74 = tpu.concatenate %71, %72, %73 in 2 : vector<8x8x64xbf16>, vector<8x8x64xbf16>, vector<8x8x64xbf16> -> vector<8x8x192xbf16>
    %75 = vector.shape_cast %74 : vector<8x8x192xbf16> to vector<64x192xbf16>
    %c0_36 = arith.constant 0 : index
    %c0_37 = arith.constant 0 : index
    %c0_38 = arith.constant 0 : index
    %76 = vector.load %arg6[%c0_36, %c0_37, %c0_38] : memref<3x192x64xbf16, #tpu.memory_space<vmem>>, vector<1x192x64xbf16>
    %77 = vector.shape_cast %76 : vector<1x192x64xbf16> to vector<192x64xbf16>
    %cst_39 = arith.constant dense<0.000000e+00> : vector<64x64xf32>
    %78 = tpu.matmul %75, %77, %cst_39 {dimension_numbers = #tpu.dot_dimension_numbers<[1], [0], [0], [1], [0, 0, 1, 1], [], []>} : vector<64x192xbf16>, vector<192x64xbf16>, vector<64x64xf32> -> vector<64x64xf32>
    %79 = arith.addf %68, %78 : vector<64x64xf32>
    %80 = vector.extract_strided_slice %66 {offsets = [0, 0, 0], sizes = [8, 8, 64], strides = [1, 1, 1]} : vector<10x8x64xbf16> to vector<8x8x64xbf16>
    %81 = vector.extract_strided_slice %66 {offsets = [1, 0, 0], sizes = [8, 8, 64], strides = [1, 1, 1]} : vector<10x8x64xbf16> to vector<8x8x64xbf16>
    %82 = vector.extract_strided_slice %66 {offsets = [2, 0, 0], sizes = [8, 8, 64], strides = [1, 1, 1]} : vector<10x8x64xbf16> to vector<8x8x64xbf16>
    %83 = tpu.concatenate %80, %81, %82 in 2 : vector<8x8x64xbf16>, vector<8x8x64xbf16>, vector<8x8x64xbf16> -> vector<8x8x192xbf16>
    %84 = vector.shape_cast %83 : vector<8x8x192xbf16> to vector<64x192xbf16>
    %c1_40 = arith.constant 1 : index
    %c0_41 = arith.constant 0 : index
    %c0_42 = arith.constant 0 : index
    %85 = vector.load %arg6[%c1_40, %c0_41, %c0_42] : memref<3x192x64xbf16, #tpu.memory_space<vmem>>, vector<1x192x64xbf16>
    %86 = vector.shape_cast %85 : vector<1x192x64xbf16> to vector<192x64xbf16>
    %cst_43 = arith.constant dense<0.000000e+00> : vector<64x64xf32>
    %87 = tpu.matmul %84, %86, %cst_43 {dimension_numbers = #tpu.dot_dimension_numbers<[1], [0], [0], [1], [0, 0, 1, 1], [], []>} : vector<64x192xbf16>, vector<192x64xbf16>, vector<64x64xf32> -> vector<64x64xf32>
    %88 = arith.addf %79, %87 : vector<64x64xf32>
    %89 = vector.extract_strided_slice %66 {offsets = [0, 1, 0], sizes = [10, 7, 64], strides = [1, 1, 1]} : vector<10x8x64xbf16> to vector<10x7x64xbf16>
    %90 = tpu.concatenate %89, %67 in 1 : vector<10x7x64xbf16>, vector<10x1x64xbf16> -> vector<10x8x64xbf16>
    %91 = vector.extract_strided_slice %90 {offsets = [0, 0, 0], sizes = [8, 8, 64], strides = [1, 1, 1]} : vector<10x8x64xbf16> to vector<8x8x64xbf16>
    %92 = vector.extract_strided_slice %90 {offsets = [1, 0, 0], sizes = [8, 8, 64], strides = [1, 1, 1]} : vector<10x8x64xbf16> to vector<8x8x64xbf16>
    %93 = vector.extract_strided_slice %90 {offsets = [2, 0, 0], sizes = [8, 8, 64], strides = [1, 1, 1]} : vector<10x8x64xbf16> to vector<8x8x64xbf16>
    %94 = tpu.concatenate %91, %92, %93 in 2 : vector<8x8x64xbf16>, vector<8x8x64xbf16>, vector<8x8x64xbf16> -> vector<8x8x192xbf16>
    %95 = vector.shape_cast %94 : vector<8x8x192xbf16> to vector<64x192xbf16>
    %c2_44 = arith.constant 2 : index
    %c0_45 = arith.constant 0 : index
    %c0_46 = arith.constant 0 : index
    %96 = vector.load %arg6[%c2_44, %c0_45, %c0_46] : memref<3x192x64xbf16, #tpu.memory_space<vmem>>, vector<1x192x64xbf16>
    %97 = vector.shape_cast %96 : vector<1x192x64xbf16> to vector<192x64xbf16>
    %cst_47 = arith.constant dense<0.000000e+00> : vector<64x64xf32>
    %98 = tpu.matmul %95, %97, %cst_47 {dimension_numbers = #tpu.dot_dimension_numbers<[1], [0], [0], [1], [0, 0, 1, 1], [], []>} : vector<64x192xbf16>, vector<192x64xbf16>, vector<64x64xf32> -> vector<64x64xf32>
    %99 = arith.addf %88, %98 : vector<64x64xf32>
    %cst_48 = arith.constant dense<0.000000e+00> : vector<64xf32>
    %100 = vector.multi_reduction <add>, %99, %cst_48 [0] : vector<64x64xf32> to vector<64xf32>
    %101 = vector.shape_cast %100 : vector<64xf32> to vector<1x64xf32>
    %102 = arith.mulf %99, %99 : vector<64x64xf32>
    %cst_49 = arith.constant dense<0.000000e+00> : vector<64xf32>
    %103 = vector.multi_reduction <add>, %102, %cst_49 [0] : vector<64x64xf32> to vector<64xf32>
    %104 = vector.shape_cast %103 : vector<64xf32> to vector<1x64xf32>
    %105 = tpu.concatenate %101, %104 in 0 : vector<1x64xf32>, vector<1x64xf32> -> vector<2x64xf32>
    %c0_50 = arith.constant 0 : index
    %c0_51 = arith.constant 0 : index
    %106 = vector.load %arg9[%c0_50, %c0_51] : memref<64x64xf32, #tpu.memory_space<vmem>>, vector<64x64xf32>
    %cst_52 = arith.constant dense<0.000000e+00> : vector<2x64xf32>
    %107 = tpu.matmul %105, %106, %cst_52 {dimension_numbers = #tpu.dot_dimension_numbers<[1], [0], [0], [1], [0, 0, 1, 1], [], []>} : vector<2x64xf32>, vector<64x64xf32>, vector<2x64xf32> -> vector<2x64xf32>
    %108 = vector.extract_strided_slice %107 {offsets = [0, 0], sizes = [1, 64], strides = [1, 1]} : vector<2x64xf32> to vector<1x64xf32>
    %109 = vector.extract_strided_slice %107 {offsets = [1, 0], sizes = [1, 64], strides = [1, 1]} : vector<2x64xf32> to vector<1x64xf32>
    %110 = arith.mulf %108, %108 : vector<1x64xf32>
    %111 = arith.subf %109, %110 : vector<1x64xf32>
    %cst_53 = arith.constant 0.000000e+00 : f32
    %112 = vector.broadcast %cst_53 : f32 to vector<1x64xf32>
    %113 = arith.maximumf %111, %112 : vector<1x64xf32>
    %cst_54 = arith.constant 9.99999974E-6 : f32
    %114 = vector.broadcast %cst_54 : f32 to vector<1x64xf32>
    %115 = arith.addf %113, %114 : vector<1x64xf32>
    %116 = math.rsqrt %115 : vector<1x64xf32>
    %117 = vector.broadcast %108 : vector<1x64xf32> to vector<64x64xf32>
    %118 = arith.subf %99, %117 : vector<64x64xf32>
    %119 = vector.broadcast %116 : vector<1x64xf32> to vector<64x64xf32>
    %120 = arith.mulf %118, %119 : vector<64x64xf32>
    %c0_55 = arith.constant 0 : index
    %c0_56 = arith.constant 0 : index
    %121 = vector.load %arg7[%c0_55, %c0_56] : memref<1x64xf32, #tpu.memory_space<vmem>>, vector<1x64xf32>
    %122 = vector.broadcast %121 : vector<1x64xf32> to vector<64x64xf32>
    %123 = arith.mulf %120, %122 : vector<64x64xf32>
    %c0_57 = arith.constant 0 : index
    %c0_58 = arith.constant 0 : index
    %124 = vector.load %arg8[%c0_57, %c0_58] : memref<1x64xf32, #tpu.memory_space<vmem>>, vector<1x64xf32>
    %125 = vector.broadcast %124 : vector<1x64xf32> to vector<64x64xf32>
    %126 = arith.addf %123, %125 : vector<64x64xf32>
    %c0_59 = arith.constant 0 : index
    %c0_60 = arith.constant 0 : index
    %c0_61 = arith.constant 0 : index
    %127 = vector.load %arg2[%c0_59, %c0_60, %c0_61] : memref<1x64x64xf32, #tpu.memory_space<vmem>>, vector<1x64x64xf32>
    %128 = vector.shape_cast %127 : vector<1x64x64xf32> to vector<64x64xf32>
    %129 = arith.addf %126, %128 : vector<64x64xf32>
    %cst_62 = arith.constant 0.000000e+00 : f32
    %130 = vector.broadcast %cst_62 : f32 to vector<64x64xf32>
    %131 = arith.maximumf %129, %130 : vector<64x64xf32>
    %c0_63 = arith.constant 0 : index
    %c0_64 = arith.constant 0 : index
    %c0_65 = arith.constant 0 : index
    %132 = vector.load %arg10[%c0_63, %c0_64, %c0_65] : memref<1x64x64xf32, #tpu.memory_space<vmem>>, vector<1x64x64xf32>
    %133 = vector.shape_cast %132 : vector<1x64x64xf32> to vector<64x64xf32>
    %134 = vector.shape_cast %131 : vector<64x64xf32> to vector<1x64x64xf32>
    tpu.vector_store %arg10[%c0_63, %c0_64, %c0_65], %134 {strides = array<i32>} : memref<1x64x64xf32, #tpu.memory_space<vmem>>, vector<1x64x64xf32>,
    return
  }
  func.func @transform_0(%arg0: i32) -> (i32, i32, i32, i32) {
    %c0_i32 = arith.constant 0 : i32
    %c0_i32_0 = arith.constant 0 : i32
    %c0_i32_1 = arith.constant 0 : i32
    %c0_i32_2 = arith.constant 0 : i32
    return %arg0, %c0_i32, %c0_i32_0, %c0_i32_1 : i32, i32, i32, i32
  }
  func.func @transform_1(%arg0: i32) -> (i32, i32, i32) {
    %c0_i32 = arith.constant 0 : i32
    %c0_i32_0 = arith.constant 0 : i32
    %c0_i32_1 = arith.constant 0 : i32
    return %arg0, %c0_i32, %c0_i32_0 : i32, i32, i32
  }
  func.func @transform_2(%arg0: i32) -> (i32, i32, i32) {
    %c0_i32 = arith.constant 0 : i32
    %c0_i32_0 = arith.constant 0 : i32
    %c0_i32_1 = arith.constant 0 : i32
    %c0_i32_2 = arith.constant 0 : i32
    return %c0_i32, %c0_i32_0, %c0_i32_1 : i32, i32, i32
  }
  func.func @transform_3(%arg0: i32) -> (i32, i32) {
    %c0_i32 = arith.constant 0 : i32
    %c0_i32_0 = arith.constant 0 : i32
    %c0_i32_1 = arith.constant 0 : i32
    return %c0_i32, %c0_i32_0 : i32, i32
  }
  func.func @transform_4(%arg0: i32) -> (i32, i32) {
    %c0_i32 = arith.constant 0 : i32
    %c0_i32_0 = arith.constant 0 : i32
    %c0_i32_1 = arith.constant 0 : i32
    return %c0_i32, %c0_i32_0 : i32, i32
  }
  func.func @transform_5(%arg0: i32) -> (i32, i32, i32) {
    %c0_i32 = arith.constant 0 : i32
    %c0_i32_0 = arith.constant 0 : i32
    %c0_i32_1 = arith.constant 0 : i32
    %c0_i32_2 = arith.constant 0 : i32
    return %c0_i32, %c0_i32_0, %c0_i32_1 : i32, i32, i32
  }
  func.func @transform_6(%arg0: i32) -> (i32, i32) {
    %c0_i32 = arith.constant 0 : i32
    %c0_i32_0 = arith.constant 0 : i32
    %c0_i32_1 = arith.constant 0 : i32
    return %c0_i32, %c0_i32_0 : i32, i32
  }
  func.func @transform_7(%arg0: i32) -> (i32, i32) {
    %c0_i32 = arith.constant 0 : i32
    %c0_i32_0 = arith.constant 0 : i32
    %c0_i32_1 = arith.constant 0 : i32
    return %c0_i32, %c0_i32_0 : i32, i32
  }
  func.func @transform_8(%arg0: i32) -> (i32, i32) {
    %c0_i32 = arith.constant 0 : i32
    %c0_i32_0 = arith.constant 0 : i32
    %c0_i32_1 = arith.constant 0 : i32
    return %c0_i32, %c0_i32_0 : i32, i32
  }
  func.func @transform_9(%arg0: i32) -> (i32, i32, i32) {
    %c0_i32 = arith.constant 0 : i32
    %c0_i32_0 = arith.constant 0 : i32
    %c0_i32_1 = arith.constant 0 : i32
    return %arg0, %c0_i32, %c0_i32_0 : i32, i32, i32
  }
}

</mosaic_0001>

<llo_original>
// kernel: tpu_custom_call.1
$region0: #{tpu_custom_call.1}
  #allocation0 [shape = 'u32[]', space=smem, size = 0x4, offset = 0x4, fixed_abs, tag = 'smem constant byte address 0x4 - core index']
  #allocation1 [shape = 'u32[144,128]{1,0:T(1,128)}', space=vmem, size = 0x12000, scoped, tag = 'internal scratch']
  %s0 = inlined_call_operand.vmem [shape: bf16[2,10,10,64], index: 0, kind: input, shape index: {}]
  %s1 = inlined_call_operand.vmem [shape: f32[2,64,64], index: 1, kind: input, shape index: {}]
  %s2 = inlined_call_operand.vmem [shape: bf16[3,192,64], index: 2, kind: input, shape index: {}]
  %s3 = inlined_call_operand.vmem [shape: f32[1,64], index: 3, kind: input, shape index: {}]
  %s4 = inlined_call_operand.vmem [shape: f32[1,64], index: 4, kind: input, shape index: {}]
  %s5 = inlined_call_operand.vmem [shape: bf16[3,192,64], index: 5, kind: input, shape index: {}]
  %s6 = inlined_call_operand.vmem [shape: f32[1,64], index: 6, kind: input, shape index: {}]
  %s7 = inlined_call_operand.vmem [shape: f32[1,64], index: 7, kind: input, shape index: {}]
  %s8 = inlined_call_operand.vmem [shape: f32[64,64], index: 8, kind: input, shape index: {}]
  %s9 = inlined_call_operand.hbm [shape: f32[2,64,64], index: 9, kind: output, shape index: {}]
  %s10 = sld [smem:[#allocation0]]
  $region69: #{tpu_custom_call.1} parent=0
    _
  %s12 = ssub.s32 1, %s10
  %s13 = scalar_select 0, %s12, %s10
  $region1: #{tpu_custom_call.1} parent=0
    #allocation2 [shape = 'u8[65536]{0}', space=vmem, size = 0x10000, scoped, tag = 'output window, operand 0']
    #allocation3 [shape = 's32[2]{0}', space=sflag, size = 0x8, scoped, tag = 'scoped memory for tpu_custom_call.1']
    %14 = vsyncpa [#allocation3], 0
    %s15 = scalar_lea.sflag [#allocation3], 1
    %16 = vsyncpa %s15, 0
    loop: start=0, step=1, limit=4
    $region2: #{tpu_custom_call.1} parent=1 // loop_pre_header
      _
    $region3: #{tpu_custom_call.1} parent=1 // loop_header
      %s18 = sphi 0, %s22
      %p19 = scmp.ge.s32.totalorder %s18, 4
      %s28 = sphi 0, %s30
      %s31 = sphi 0, %s28
      %s32 = sphi 0, %s31
      %s48 = sphi 0, %s32
      %s54 = sphi 0, %s56
      %s57 = sphi 0, %s54
      %s58 = sphi 0, %s57
      %s74 = sphi 0, %s58
      %s78 = sphi 0, %s78
      %s80 = sphi 0, %s78
      %s81 = sphi 0, %s80
      %s95 = sphi 0, %s81
      %s99 = sphi 0, %s99
      %s101 = sphi 0, %s99
      %s102 = sphi 0, %s101
      %s116 = sphi 0, %s102
      %s120 = sphi 0, %s120
      %s122 = sphi 0, %s120
      %s123 = sphi 0, %s122
      %s137 = sphi 0, %s123
      %s141 = sphi 0, %s141
      %s143 = sphi 0, %s141
      %s144 = sphi 0, %s143
      %s158 = sphi 0, %s144
      %s162 = sphi 0, %s162
      %s164 = sphi 0, %s162
      %s165 = sphi 0, %s164
      %s179 = sphi 0, %s165
      %s183 = sphi 0, %s183
      %s185 = sphi 0, %s183
      %s186 = sphi 0, %s185
      %s200 = sphi 0, %s186
      %s204 = sphi 0, %s204
      %s206 = sphi 0, %s204
      %s207 = sphi 0, %s206
      %s221 = sphi 0, %s207
      %s227 = sphi 0, %s229
      %s230 = sphi 0, %s227
      %s231 = sphi 0, %s230
      %s247 = sphi 0, %s231
    $region4: #{tpu_custom_call.1} parent=1 // loop_header_branch
      %21 = sbr.rel (%p19) target = $region8
    $region5: #{tpu_custom_call.1} parent=1 // loop_body
      %s23 = ssub.s32 %s18, 1
      %s24 = ssub.s32 %s18, 2
      %s25 = sadd.s32 %s18, 1
      %s26 = ssub.s32 %s18, %s25
      %p27 = scmp.eq.s32.totalorder %s26, 0
      %s29 = sadd.s32 %s28, 1
      %s30 = scalar_select %p27, %s28, %s29
      %p33 = pneg %p27
      %p34 = scmp.eq.s32.totalorder %s18, 1
      %p35 = por %p33, %p34
      %p36 = scmp.ne.s32.totalorder %s28, %s31
      %p37 = scmp.eq.s32.totalorder %s18, 0
      %p38 = por %p36, %p37
      %p39 = scmp.ne.s32.totalorder %s28, %s31
      %p40 = scmp.eq.s32.totalorder %s23, 1
      %p41 = por %p39, %p40
      %p42 = scmp.ne.s32.totalorder %s31, %s32
      %p43 = scmp.eq.s32.totalorder %s23, 0
      %p44 = por %p42, %p43
      %p45 = scmp.ne.s32.totalorder %s31, %s32
      %p46 = scmp.eq.s32.totalorder %s24, 1
      %p47 = por %p45, %p46
      %p49 = scmp.ne.s32.totalorder %s32, %s48
      %p50 = scmp.eq.s32.totalorder %s24, 0
      %p51 = por %p49, %p50
      %s52 = ssub.s32 %s18, %s25
      %p53 = scmp.eq.s32.totalorder %s52, 0
      %s55 = sadd.s32 %s54, 1
      %s56 = scalar_select %p53, %s54, %s55
      %p59 = pneg %p53
      %p60 = scmp.eq.s32.totalorder %s18, 1
      %p61 = por %p59, %p60
      %p62 = scmp.ne.s32.totalorder %s54, %s57
      %p63 = scmp.eq.s32.totalorder %s18, 0
      %p64 = por %p62, %p63
      %p65 = scmp.ne.s32.totalorder %s54, %s57
      %p66 = scmp.eq.s32.totalorder %s23, 1
      %p67 = por %p65, %p66
      %p68 = scmp.ne.s32.totalorder %s57, %s58
      %p69 = scmp.eq.s32.totalorder %s23, 0
      %p70 = por %p68, %p69
      %p71 = scmp.ne.s32.totalorder %s57, %s58
      %p72 = scmp.eq.s32.totalorder %s24, 1
      %p73 = por %p71, %p72
      %p75 = scmp.ne.s32.totalorder %s58, %s74
      %p76 = scmp.eq.s32.totalorder %s24, 0
      %p77 = por %p75, %p76
      %s79 = sadd.s32 %s78, 1
      %p82 = scmp.eq.s32.totalorder %s18, 1
      %p83 = scmp.ne.s32.totalorder %s78, %s80
      %p84 = scmp.eq.s32.totalorder %s18, 0
      %p85 = por %p83, %p84
      %p86 = scmp.ne.s32.totalorder %s78, %s80
      %p87 = scmp.eq.s32.totalorder %s23, 1
      %p88 = por %p86, %p87
      %p89 = scmp.ne.s32.totalorder %s80, %s81
      %p90 = scmp.eq.s32.totalorder %s23, 0
      %p91 = por %p89, %p90
      %p92 = scmp.ne.s32.totalorder %s80, %s81
      %p93 = scmp.eq.s32.totalorder %s24, 1
      %p94 = por %p92, %p93
      %p96 = scmp.ne.s32.totalorder %s81, %s95
      %p97 = scmp.eq.s32.totalorder %s24, 0
      %p98 = por %p96, %p97
      %s100 = sadd.s32 %s99, 1
      %p103 = scmp.eq.s32.totalorder %s18, 1
      %p104 = scmp.ne.s32.totalorder %s99, %s101
      %p105 = scmp.eq.s32.totalorder %s18, 0
      %p106 = por %p104, %p105
      %p107 = scmp.ne.s32.totalorder %s99, %s101
      %p108 = scmp.eq.s32.totalorder %s23, 1
      %p109 = por %p107, %p108
      %p110 = scmp.ne.s32.totalorder %s101, %s102
      %p111 = scmp.eq.s32.totalorder %s23, 0
      %p112 = por %p110, %p111
      %p113 = scmp.ne.s32.totalorder %s101, %s102
      %p114 = scmp.eq.s32.totalorder %s24, 1
      %p115 = por %p113, %p114
      %p117 = scmp.ne.s32.totalorder %s102, %s116
      %p118 = scmp.eq.s32.totalorder %s24, 0
      %p119 = por %p117, %p118
      %s121 = sadd.s32 %s120, 1
      %p124 = scmp.eq.s32.totalorder %s18, 1
      %p125 = scmp.ne.s32.totalorder %s120, %s122
      %p126 = scmp.eq.s32.totalorder %s18, 0
      %p127 = por %p125, %p126
      %p128 = scmp.ne.s32.totalorder %s120, %s122
      %p129 = scmp.eq.s32.totalorder %s23, 1
      %p130 = por %p128, %p129
      %p131 = scmp.ne.s32.totalorder %s122, %s123
      %p132 = scmp.eq.s32.totalorder %s23, 0
      %p133 = por %p131, %p132
      %p134 = scmp.ne.s32.totalorder %s122, %s123
      %p135 = scmp.eq.s32.totalorder %s24, 1
      %p136 = por %p134, %p135
      %p138 = scmp.ne.s32.totalorder %s123, %s137
      %p139 = scmp.eq.s32.totalorder %s24, 0
      %p140 = por %p138, %p139
      %s142 = sadd.s32 %s141, 1
      %p145 = scmp.eq.s32.totalorder %s18, 1
      %p146 = scmp.ne.s32.totalorder %s141, %s143
      %p147 = scmp.eq.s32.totalorder %s18, 0
      %p148 = por %p146, %p147
      %p149 = scmp.ne.s32.totalorder %s141, %s143
      %p150 = scmp.eq.s32.totalorder %s23, 1
      %p151 = por %p149, %p150
      %p152 = scmp.ne.s32.totalorder %s143, %s144
      %p153 = scmp.eq.s32.totalorder %s23, 0
      %p154 = por %p152, %p153
      %p155 = scmp.ne.s32.totalorder %s143, %s144
      %p156 = scmp.eq.s32.totalorder %s24, 1
      %p157 = por %p155, %p156
      %p159 = scmp.ne.s32.totalorder %s144, %s158
      %p160 = scmp.eq.s32.totalorder %s24, 0
      %p161 = por %p159, %p160
      %s163 = sadd.s32 %s162, 1
      %p166 = scmp.eq.s32.totalorder %s18, 1
      %p167 = scmp.ne.s32.totalorder %s162, %s164
      %p168 = scmp.eq.s32.totalorder %s18, 0
      %p169 = por %p167, %p168
      %p170 = scmp.ne.s32.totalorder %s162, %s164
      %p171 = scmp.eq.s32.totalorder %s23, 1
      %p172 = por %p170, %p171
      %p173 = scmp.ne.s32.totalorder %s164, %s165
      %p174 = scmp.eq.s32.totalorder %s23, 0
      %p175 = por %p173, %p174
      %p176 = scmp.ne.s32.totalorder %s164, %s165
      %p177 = scmp.eq.s32.totalorder %s24, 1
      %p178 = por %p176, %p177
      %p180 = scmp.ne.s32.totalorder %s165, %s179
      %p181 = scmp.eq.s32.totalorder %s24, 0
      %p182 = por %p180, %p181
      %s184 = sadd.s32 %s183, 1
      %p187 = scmp.eq.s32.totalorder %s18, 1
      %p188 = scmp.ne.s32.totalorder %s183, %s185
      %p189 = scmp.eq.s32.totalorder %s18, 0
      %p190 = por %p188, %p189
      %p191 = scmp.ne.s32.totalorder %s183, %s185
      %p192 = scmp.eq.s32.totalorder %s23, 1
      %p193 = por %p191, %p192
      %p194 = scmp.ne.s32.totalorder %s185, %s186
      %p195 = scmp.eq.s32.totalorder %s23, 0
      %p196 = por %p194, %p195
      %p197 = scmp.ne.s32.totalorder %s185, %s186
      %p198 = scmp.eq.s32.totalorder %s24, 1
      %p199 = por %p197, %p198
      %p201 = scmp.ne.s32.totalorder %s186, %s200
      %p202 = scmp.eq.s32.totalorder %s24, 0
      %p203 = por %p201, %p202
      %s205 = sadd.s32 %s204, 1
      %p208 = scmp.eq.s32.totalorder %s18, 1
      %p209 = scmp.ne.s32.totalorder %s204, %s206
      %p210 = scmp.eq.s32.totalorder %s18, 0
      %p211 = por %p209, %p210
      %p212 = scmp.ne.s32.totalorder %s204, %s206
      %p213 = scmp.eq.s32.totalorder %s23, 1
      %p214 = por %p212, %p213
      %p215 = scmp.ne.s32.totalorder %s206, %s207
      %p216 = scmp.eq.s32.totalorder %s23, 0
      %p217 = por %p215, %p216
      %p218 = scmp.ne.s32.totalorder %s206, %s207
      %p219 = scmp.eq.s32.totalorder %s24, 1
      %p220 = por %p218, %p219
      %p222 = scmp.ne.s32.totalorder %s207, %s221
      %p223 = scmp.eq.s32.totalorder %s24, 0
      %p224 = por %p222, %p223
      %s225 = ssub.s32 %s18, %s25
      %p226 = scmp.eq.s32.totalorder %s225, 0
      %s228 = sadd.s32 %s227, 1
      %s229 = scalar_select %p226, %s227, %s228
      %p232 = pneg %p226
      %p233 = scmp.eq.s32.totalorder %s18, 1
      %p234 = por %p232, %p233
      %p235 = scmp.ne.s32.totalorder %s227, %s230
      %p236 = scmp.eq.s32.totalorder %s18, 0
      %p237 = por %p235, %p236
      %p238 = scmp.ne.s32.totalorder %s227, %s230
      %p239 = scmp.eq.s32.totalorder %s23, 1
      %p240 = por %p238, %p239
      %p241 = scmp.ne.s32.totalorder %s230, %s231
      %p242 = scmp.eq.s32.totalorder %s23, 0
      %p243 = por %p241, %p242
      %p244 = scmp.ne.s32.totalorder %s230, %s231
      %p245 = scmp.eq.s32.totalorder %s24, 1
      %p246 = por %p244, %p245
      %p248 = scmp.ne.s32.totalorder %s231, %s247
      %p249 = scmp.eq.s32.totalorder %s24, 0
      %p250 = por %p248, %p249
      %p251 = scmp.le.s32.totalorder 1, %s18
      %p252 = scmp.lt.s32.totalorder %s18, 3
      %p253 = pnand %p251, %p252
      %p254 = pneg %p253
      // Predicated region
      $region9: #{tpu_custom_call.1} parent=5 // pred_check
        _
      $region10: #{tpu_custom_call.1} parent=5 // pred_check_branch
        %256 = sbr.rel (%p253) target = $region12
      $region11: #{tpu_custom_call.1} parent=5 // pred_region
        %s257 = ssub.s32 %s18, 1
        // Predicated region
        $region13: #{tpu_custom_call.1} parent=11 // pred_check
          %p258 = pneg %p91
        $region14: #{tpu_custom_call.1} parent=11 // pred_check_branch
          %260 = sbr.rel (%p258) target = $region16
        $region15: #{tpu_custom_call.1} parent=11 // pred_region
          _
        $region16: #{tpu_custom_call.1} parent=11 // pred_fallthru
          _
        // Predicated region
        $region17: #{tpu_custom_call.1} parent=11 // pred_check
          %p261 = pneg %p112
        $region18: #{tpu_custom_call.1} parent=11 // pred_check_branch
          %263 = sbr.rel (%p261) target = $region20
        $region19: #{tpu_custom_call.1} parent=11 // pred_region
          _
        $region20: #{tpu_custom_call.1} parent=11 // pred_fallthru
          _
        // Predicated region
        $region21: #{tpu_custom_call.1} parent=11 // pred_check
          %p264 = pneg %p133
        $region22: #{tpu_custom_call.1} parent=11 // pred_check_branch
          %266 = sbr.rel (%p264) target = $region24
        $region23: #{tpu_custom_call.1} parent=11 // pred_region
          _
        $region24: #{tpu_custom_call.1} parent=11 // pred_fallthru
          _
        // Predicated region
        $region25: #{tpu_custom_call.1} parent=11 // pred_check
          %p267 = pneg %p154
        $region26: #{tpu_custom_call.1} parent=11 // pred_check_branch
          %269 = sbr.rel (%p267) target = $region28
        $region27: #{tpu_custom_call.1} parent=11 // pred_region
          _
        $region28: #{tpu_custom_call.1} parent=11 // pred_fallthru
          _
        // Predicated region
        $region29: #{tpu_custom_call.1} parent=11 // pred_check
          %p270 = pneg %p175
        $region30: #{tpu_custom_call.1} parent=11 // pred_check_branch
          %272 = sbr.rel (%p270) target = $region32
        $region31: #{tpu_custom_call.1} parent=11 // pred_region
          _
        $region32: #{tpu_custom_call.1} parent=11 // pred_fallthru
          _
        // Predicated region
        $region33: #{tpu_custom_call.1} parent=11 // pred_check
          %p273 = pneg %p196
        $region34: #{tpu_custom_call.1} parent=11 // pred_check_branch
          %275 = sbr.rel (%p273) target = $region36
        $region35: #{tpu_custom_call.1} parent=11 // pred_region
          _
        $region36: #{tpu_custom_call.1} parent=11 // pred_fallthru
          _
        // Predicated region
        $region37: #{tpu_custom_call.1} parent=11 // pred_check
          %p276 = pneg %p217
        $region38: #{tpu_custom_call.1} parent=11 // pred_check_branch
          %278 = sbr.rel (%p276) target = $region40
        $region39: #{tpu_custom_call.1} parent=11 // pred_region
          _
        $region40: #{tpu_custom_call.1} parent=11 // pred_fallthru
          _
      $region12: #{tpu_custom_call.1} parent=5 // pred_fallthru
        _
      %p279 = scmp.lt.s32.totalorder %s18, 2
      // Predicated region
      $region41: #{tpu_custom_call.1} parent=5 // pred_check
        %p280 = pneg %p279
      $region42: #{tpu_custom_call.1} parent=5 // pred_check_branch
        %282 = sbr.rel (%p280) target = $region44
      $region43: #{tpu_custom_call.1} parent=5 // pred_region
        // Predicated region
        $region45: #{tpu_custom_call.1} parent=43 // pred_check
          %p283 = pneg %p38
        $region46: #{tpu_custom_call.1} parent=43 // pred_check_branch
          %285 = sbr.rel (%p283) target = $region48
        $region47: #{tpu_custom_call.1} parent=43 // pred_region
          %p286 = scmp.lt.s32.totalorder %s18, 1
          %s287 = scalar_select %p286, %s18, 1
          %s288 = smul.addr %s287, 20
          %s289 = smul.addr %s288, 4
          %s290 = scalar_lea.vmem %s0, %s289
        $region48: #{tpu_custom_call.1} parent=43 // pred_fallthru
          _
        // Predicated region
        $region49: #{tpu_custom_call.1} parent=43 // pred_check
          %p291 = pneg %p64
        $region50: #{tpu_custom_call.1} parent=43 // pred_check_branch
          %293 = sbr.rel (%p291) target = $region52
        $region51: #{tpu_custom_call.1} parent=43 // pred_region
          %p294 = scmp.lt.s32.totalorder %s18, 1
          %s295 = scalar_select %p294, %s18, 1
          %s296 = smul.addr %s295, 8
          %s297 = smul.addr %s296, 8
          %s298 = scalar_lea.vmem %s1, %s297
        $region52: #{tpu_custom_call.1} parent=43 // pred_fallthru
          _
      $region44: #{tpu_custom_call.1} parent=5 // pred_fallthru
        _
      %p299 = scmp.le.s32.totalorder 1, %s18
      %p300 = scmp.lt.s32.totalorder %s18, 3
      %p301 = pnand %p299, %p300
      %p302 = pneg %p301
      // Predicated region
      $region53: #{tpu_custom_call.1} parent=5 // pred_check
        _
      $region54: #{tpu_custom_call.1} parent=5 // pred_check_branch
        %304 = sbr.rel (%p301) target = $region56
      $region55: #{tpu_custom_call.1} parent=5 // pred_region
        %s305 = ssub.s32 %s18, 1
        %p306 = scmp.lt.s32.totalorder %s23, 1
        %s307 = scalar_select %p306, %s23, 1
        %s308 = smul.addr %s307, 20
        %s309 = smul.addr %s308, 4
        %s310 = scalar_lea.vmem %s0, %s309
        %p311 = pneg %p44
        %p312 = pneg %p41
        %p313 = scmp.lt.s32.totalorder %s23, 1
        %s314 = scalar_select %p313, %s23, 1
        %s315 = smul.addr %s314, 8
        %s316 = smul.addr %s315, 8
        %s317 = scalar_lea.vmem %s1, %s316
        %p318 = pneg %p70
        %p319 = pneg %p67
        %p320 = pneg %p91
        %p321 = pneg %p88
        %p322 = pneg %p112
        %p323 = pneg %p109
        %p324 = pneg %p133
        %p325 = pneg %p130
        %p326 = pneg %p154
        %p327 = pneg %p151
        %p328 = pneg %p175
        %p329 = pneg %p172
        %p330 = pneg %p196
        %p331 = pneg %p193
        %p332 = pneg %p217
        %p333 = pneg %p214
        %p334 = pneg %p243
        %p335 = pneg %p240
        %s336 = sand.u32 %s230, 1
        %s337 = scalar_lea.sflag [#allocation3], %s336
        %s338 = sand.u32 %s230, 1
        %s339 = smul.addr %s338, 64
        %s340 = scalar_lea.vmem [#allocation2], %s339
        %p341 = scmp.lt.s32.totalorder %s23, 1
        %s342 = scalar_select %p341, %s23, 1
        %s343 = smul.addr %s342, 20
        %s344 = smul.addr %s343, 4
        %s345 = scalar_lea.vmem %s0, %s344
        %p346 = scmp.lt.s32.totalorder %s23, 1
        %s347 = scalar_select %p346, %s23, 1
        %s348 = smul.addr %s347, 8
        %s349 = smul.addr %s348, 8
        %s350 = scalar_lea.vmem %s1, %s349
        %v352 = vld [vmem:[%s345] sm:$0xf]
        %v353 = vld [vmem:[%s345 + $0x8] sm:$0xf]
        %v354 = vld [vmem:[%s345 + $0x10] sm:$0xf]
        %v355 = vld [vmem:[%s345 + $0x18] sm:$0xf]
        %v356 = vld [vmem:[%s345 + $0x20] sm:$0xf]
        %v357 = vld [vmem:[%s345 + $0x28] sm:$0xf]
        %v358 = vld [vmem:[%s345 + $0x30] sm:$0xf]
        %v359 = vld [vmem:[%s345 + $0x38] sm:$0xf]
        %v360 = vld [vmem:[%s345 + $0x40] sm:$0xf]
        %v361 = vld [vmem:[%s345 + $0x48] sm:$0xf]
        %v370 = vunpack.c.l.b16 %v353
        %v371 = vunpack.c.l.b16 %v354
        %v372 = vunpack.c.l.b16 %v355
        %v373 = vunpack.c.l.b16 %v356
        %v374 = vunpack.c.l.b16 %v357
        %v375 = vunpack.c.l.b16 %v358
        %v376 = vunpack.c.l.b16 %v359
        %v377 = vunpack.c.l.b16 %v360
        %v378 = vpack.c.b16 %v370, %v370
        %v379 = vpack.c.b16 %v371, %v371
        %v380 = vpack.c.b16 %v372, %v372
        %v381 = vpack.c.b16 %v373, %v373
        %v382 = vpack.c.b16 %v374, %v374
        %v383 = vpack.c.b16 %v375, %v375
        %v384 = vpack.c.b16 %v376, %v376
        %v385 = vpack.c.b16 %v377, %v377
        %386 = vrot.lane.b32.xlu0 %v378, 64
        %v387 = vpop.permute.xlu0 %386
        %388 = vrot.lane.b32.xlu0 %v379, 64
        %v389 = vpop.permute.xlu0 %388
        %390 = vrot.lane.b32.xlu0 %v380, 64
        %v391 = vpop.permute.xlu0 %390
        %392 = vrot.lane.b32.xlu0 %v381, 64
        %v393 = vpop.permute.xlu0 %392
        %394 = vrot.lane.b32.xlu0 %v382, 64
        %v395 = vpop.permute.xlu0 %394
        %396 = vrot.lane.b32.xlu0 %v383, 64
        %v397 = vpop.permute.xlu0 %396
        %398 = vrot.lane.b32.xlu0 %v384, 64
        %v399 = vpop.permute.xlu0 %398
        %400 = vrot.lane.b32.xlu0 %v385, 64
        %v401 = vpop.permute.xlu0 %400
        %vm402 = vcmask 523264
        %v405 = vsel %vm402, %v352, %v387
        %v408 = vsel %vm402, %v353, %v389
        %v411 = vsel %vm402, %v354, %v391
        %v414 = vsel %vm402, %v355, %v393
        %v417 = vsel %vm402, %v356, %v395
        %v420 = vsel %vm402, %v357, %v397
        %v423 = vsel %vm402, %v358, %v399
        %v426 = vsel %vm402, %v359, %v401
        %v436 = vunpack.c.l.b16 %v405
        %v437 = vunpack.c.l.b16 %v408
        %v438 = vunpack.c.l.b16 %v411
        %v439 = vunpack.c.l.b16 %v414
        %v440 = vunpack.c.l.b16 %v417
        %v441 = vunpack.c.l.b16 %v420
        %v442 = vunpack.c.l.b16 %v423
        %v443 = vunpack.c.l.b16 %v426
        %v444 = vunpack.c.l.b16 %v361
        %v445 = vld [vmem:[%s2] sm:$0xf]
        %v446 = vld [vmem:[%s2 + $0x4] sm:$0xf]
        %v447 = vld [vmem:[%s2 + $0x8] sm:$0xf]
        %v448 = vld [vmem:[%s2 + $0xc] sm:$0xf]
        %v449 = vld [vmem:[%s2 + $0x10] sm:$0xf]
        %v450 = vld [vmem:[%s2 + $0x14] sm:$0xf]
        %v451 = vld [vmem:[%s2 + $0x18] sm:$0xf]
        %v452 = vld [vmem:[%s2 + $0x1c] sm:$0xf]
        %v453 = vld [vmem:[%s2 + $0x20] sm:$0xf]
        %v454 = vld [vmem:[%s2 + $0x24] sm:$0xf]
        %v455 = vld [vmem:[%s2 + $0x28] sm:$0xf]
        %v456 = vld [vmem:[%s2 + $0x2c] sm:$0xf]
        %v457 = vld [vmem:[%s2 + $0x30] sm:$0xf]
        %v458 = vld [vmem:[%s2 + $0x34] sm:$0xf]
        %v459 = vld [vmem:[%s2 + $0x38] sm:$0xf]
        %v460 = vld [vmem:[%s2 + $0x3c] sm:$0xf]
        %v461 = vld [vmem:[%s2 + $0x40] sm:$0xf]
        %v462 = vld [vmem:[%s2 + $0x44] sm:$0xf]
        %v463 = vld [vmem:[%s2 + $0x48] sm:$0xf]
        %v464 = vld [vmem:[%s2 + $0x4c] sm:$0xf]
        %v465 = vld [vmem:[%s2 + $0x50] sm:$0xf]
        %v466 = vld [vmem:[%s2 + $0x54] sm:$0xf]
        %v467 = vld [vmem:[%s2 + $0x58] sm:$0xf]
        %v468 = vld [vmem:[%s2 + $0x5c] sm:$0xf]
        %v469 = vld [vmem:[%s345 + $0x4] sm:$0x1]
        %v470 = vld [vmem:[%s345 + $0xc] sm:$0x1]
        %v471 = vld [vmem:[%s345 + $0x14] sm:$0x1]
        %v472 = vld [vmem:[%s345 + $0x1c] sm:$0x1]
        %v473 = vld [vmem:[%s345 + $0x24] sm:$0x1]
        %v474 = vld [vmem:[%s345 + $0x2c] sm:$0x1]
        %v475 = vld [vmem:[%s345 + $0x34] sm:$0x1]
        %v476 = vld [vmem:[%s345 + $0x3c] sm:$0x1]
        %v477 = vld [vmem:[%s345 + $0x44] sm:$0x1]
        %v478 = vld [vmem:[%s345 + $0x4c] sm:$0x1]
        %v488 = vunpack.c.l.b16 %v352
        %v489 = vunpack.c.l.b16 %v469
        %v490 = vunpack.c.l.b16 %v470
        %v491 = vunpack.c.l.b16 %v471
        %v492 = vunpack.c.l.b16 %v472
        %v493 = vunpack.c.l.b16 %v473
        %v494 = vunpack.c.l.b16 %v474
        %v495 = vunpack.c.l.b16 %v475
        %v496 = vunpack.c.l.b16 %v476
        %v497 = vpack.c.b16 %v489, %v488
        %v498 = vpack.c.b16 %v490, %v370
        %v499 = vpack.c.b16 %v491, %v371
        %v500 = vpack.c.b16 %v492, %v372
        %v501 = vpack.c.b16 %v493, %v373
        %v502 = vpack.c.b16 %v494, %v374
        %v503 = vpack.c.b16 %v495, %v375
        %v504 = vpack.c.b16 %v496, %v376
        %v506 = vunpack.c.l.b16 %v477
        %v507 = vpack.c.b16 %v506, %v377
        %508 = vrot.lane.b32.xlu0 %v498, 64
        %v509 = vpop.permute.xlu0 %508
        %510 = vrot.lane.b32.xlu0 %v499, 64
        %v511 = vpop.permute.xlu0 %510
        %512 = vrot.lane.b32.xlu0 %v500, 64
        %v513 = vpop.permute.xlu0 %512
        %514 = vrot.lane.b32.xlu0 %v501, 64
        %v515 = vpop.permute.xlu0 %514
        %516 = vrot.lane.b32.xlu0 %v502, 64
        %v517 = vpop.permute.xlu0 %516
        %518 = vrot.lane.b32.xlu0 %v503, 64
        %v519 = vpop.permute.xlu0 %518
        %520 = vrot.lane.b32.xlu0 %v504, 64
        %v521 = vpop.permute.xlu0 %520
        %522 = vrot.lane.b32.xlu0 %v507, 64
        %v523 = vpop.permute.xlu0 %522
        %v525 = vunpack.c.l.b16 %v478
        %v528 = vsel %vm402, %v497, %v509
        %v531 = vsel %vm402, %v498, %v511
        %v534 = vsel %vm402, %v499, %v513
        %v537 = vsel %vm402, %v500, %v515
        %v540 = vsel %vm402, %v501, %v517
        %v543 = vsel %vm402, %v502, %v519
        %v546 = vsel %vm402, %v503, %v521
        %v549 = vsel %vm402, %v504, %v523
        %v558 = vunpack.c.l.b16 %v528
        %v559 = vunpack.c.h.b16 %v528
        %v560 = vunpack.c.l.b16 %v531
        %v561 = vunpack.c.h.b16 %v531
        %v562 = vunpack.c.l.b16 %v534
        %v563 = vunpack.c.h.b16 %v534
        %v564 = vunpack.c.l.b16 %v537
        %v565 = vunpack.c.h.b16 %v537
        %v566 = vunpack.c.l.b16 %v540
        %v567 = vunpack.c.h.b16 %v540
        %v568 = vunpack.c.l.b16 %v543
        %v569 = vunpack.c.h.b16 %v543
        %v570 = vunpack.c.l.b16 %v546
        %v571 = vunpack.c.h.b16 %v546
        %v572 = vunpack.c.l.b16 %v549
        %v573 = vunpack.c.h.b16 %v549
        %v574 = vpack.c.b16 %v371, %v558
        %v575 = vpack.c.b16 %v491, %v559
        %v576 = vpack.c.b16 %v372, %v560
        %v577 = vpack.c.b16 %v492, %v561
        %v578 = vpack.c.b16 %v373, %v562
        %v579 = vpack.c.b16 %v493, %v563
        %v580 = vpack.c.b16 %v374, %v564
        %v581 = vpack.c.b16 %v494, %v565
        %v582 = vpack.c.b16 %v375, %v566
        %v583 = vpack.c.b16 %v495, %v567
        %v584 = vpack.c.b16 %v376, %v568
        %v585 = vpack.c.b16 %v496, %v569
        %v586 = vpack.c.b16 %v377, %v570
        %v587 = vpack.c.b16 %v506, %v571
        %v588 = vpack.c.b16 %v444, %v572
        %v589 = vpack.c.b16 %v525, %v573
        %vm590 = vsmask.f32 3328
        %vm591 = vsmask.f32 7440
        %vm592 = vmor %vm590, %vm591
        %v594 = vshrl.u32 %v574, 16
        %v596 = vrot.slane %v594, 4
        %v597 = vshll.u32 %v574, 16
        %v599 = vrot.slane %v597, 5
        %v600 = vor.u32 %v596, %v599
        %v601 = vrot.slane %v600, 4
        %v603 = vshll.u32 %v575, 16
        %v605 = vrot.slane %v603, 5
        %v606 = vsel %vm592, %v601, %v605
        %v608 = vshrl.u32 %v576, 16
        %v610 = vrot.slane %v608, 4
        %v611 = vshll.u32 %v576, 16
        %v613 = vrot.slane %v611, 5
        %v614 = vor.u32 %v610, %v613
        %v615 = vrot.slane %v614, 4
        %v617 = vshll.u32 %v577, 16
        %v619 = vrot.slane %v617, 5
        %v620 = vsel %vm592, %v615, %v619
        %v622 = vshrl.u32 %v578, 16
        %v624 = vrot.slane %v622, 4
        %v625 = vshll.u32 %v578, 16
        %v627 = vrot.slane %v625, 5
        %v628 = vor.u32 %v624, %v627
        %v629 = vrot.slane %v628, 4
        %v631 = vshll.u32 %v579, 16
        %v633 = vrot.slane %v631, 5
        %v634 = vsel %vm592, %v629, %v633
        %v636 = vshrl.u32 %v580, 16
        %v638 = vrot.slane %v636, 4
        %v639 = vshll.u32 %v580, 16
        %v641 = vrot.slane %v639, 5
        %v642 = vor.u32 %v638, %v641
        %v643 = vrot.slane %v642, 4
        %v645 = vshll.u32 %v581, 16
        %v647 = vrot.slane %v645, 5
        %v648 = vsel %vm592, %v643, %v647
        %v650 = vshrl.u32 %v582, 16
        %v652 = vrot.slane %v650, 4
        %v653 = vshll.u32 %v582, 16
        %v655 = vrot.slane %v653, 5
        %v656 = vor.u32 %v652, %v655
        %v657 = vrot.slane %v656, 4
        %v659 = vshll.u32 %v583, 16
        %v661 = vrot.slane %v659, 5
        %v662 = vsel %vm592, %v657, %v661
        %v664 = vshrl.u32 %v584, 16
        %v666 = vrot.slane %v664, 4
        %v667 = vshll.u32 %v584, 16
        %v669 = vrot.slane %v667, 5
        %v670 = vor.u32 %v666, %v669
        %v671 = vrot.slane %v670, 4
        %v673 = vshll.u32 %v585, 16
        %v675 = vrot.slane %v673, 5
        %v676 = vsel %vm592, %v671, %v675
        %v678 = vshrl.u32 %v586, 16
        %v680 = vrot.slane %v678, 4
        %v681 = vshll.u32 %v586, 16
        %v683 = vrot.slane %v681, 5
        %v684 = vor.u32 %v680, %v683
        %v685 = vrot.slane %v684, 4
        %v687 = vshll.u32 %v587, 16
        %v689 = vrot.slane %v687, 5
        %v690 = vsel %vm592, %v685, %v689
        %v692 = vshrl.u32 %v588, 16
        %v694 = vrot.slane %v692, 4
        %v695 = vshll.u32 %v588, 16
        %v697 = vrot.slane %v695, 5
        %v698 = vor.u32 %v694, %v697
        %v699 = vrot.slane %v698, 4
        %v701 = vshll.u32 %v589, 16
        %v703 = vrot.slane %v701, 5
        %v704 = vsel %vm592, %v699, %v703
        %s705 = scalar_lea.vmem %s2, 96
        %v706 = vld [vmem:[%s705] sm:$0xf]
        %v707 = vld [vmem:[%s705 + $0x4] sm:$0xf]
        %v708 = vld [vmem:[%s705 + $0x8] sm:$0xf]
        %v709 = vld [vmem:[%s705 + $0xc] sm:$0xf]
        %v710 = vld [vmem:[%s705 + $0x10] sm:$0xf]
        %v711 = vld [vmem:[%s705 + $0x14] sm:$0xf]
        %v712 = vld [vmem:[%s705 + $0x18] sm:$0xf]
        %v713 = vld [vmem:[%s705 + $0x1c] sm:$0xf]
        %v714 = vld [vmem:[%s705 + $0x20] sm:$0xf]
        %v715 = vld [vmem:[%s705 + $0x24] sm:$0xf]
        %v716 = vld [vmem:[%s705 + $0x28] sm:$0xf]
        %v717 = vld [vmem:[%s705 + $0x2c] sm:$0xf]
        %v718 = vld [vmem:[%s705 + $0x30] sm:$0xf]
        %v719 = vld [vmem:[%s705 + $0x34] sm:$0xf]
        %v720 = vld [vmem:[%s705 + $0x38] sm:$0xf]
        %v721 = vld [vmem:[%s705 + $0x3c] sm:$0xf]
        %v722 = vld [vmem:[%s705 + $0x40] sm:$0xf]
        %v723 = vld [vmem:[%s705 + $0x44] sm:$0xf]
        %v724 = vld [vmem:[%s705 + $0x48] sm:$0xf]
        %v725 = vld [vmem:[%s705 + $0x4c] sm:$0xf]
        %v726 = vld [vmem:[%s705 + $0x50] sm:$0xf]
        %v727 = vld [vmem:[%s705 + $0x54] sm:$0xf]
        %v728 = vld [vmem:[%s705 + $0x58] sm:$0xf]
        %v729 = vld [vmem:[%s705 + $0x5c] sm:$0xf]
        %v730 = vunpack.c.l.b16 %v606
        %v731 = vunpack.c.h.b16 %v606
        %v732 = vunpack.c.l.b16 %v620
        %v733 = vunpack.c.h.b16 %v620
        %v734 = vunpack.c.l.b16 %v634
        %v735 = vunpack.c.h.b16 %v634
        %v736 = vunpack.c.l.b16 %v648
        %v737 = vunpack.c.h.b16 %v648
        %v738 = vunpack.c.l.b16 %v662
        %v739 = vunpack.c.h.b16 %v662
        %v740 = vunpack.c.l.b16 %v676
        %v741 = vunpack.c.h.b16 %v676
        %v742 = vunpack.c.l.b16 %v690
        %v743 = vunpack.c.h.b16 %v690
        %v744 = vunpack.c.l.b16 %v704
        %v745 = vunpack.c.h.b16 %v704
        %v746 = vpack.c.b16 %v732, %v730
        %v747 = vpack.c.b16 %v733, %v731
        %v748 = vpack.c.b16 %v736, %v734
        %v749 = vpack.c.b16 %v737, %v735
        %v750 = vpack.c.b16 %v740, %v738
        %v751 = vpack.c.b16 %v741, %v739
        %v752 = vpack.c.b16 %v744, %v742
        %v753 = vpack.c.b16 %v745, %v743
        %v782 = vunpack.c.l.b16 %v706
        %v783 = vunpack.c.l.b16 %v707
        %v784 = vunpack.c.l.b16 %v708
        %v785 = vunpack.c.l.b16 %v709
        %v786 = vunpack.c.l.b16 %v710
        %v787 = vunpack.c.l.b16 %v711
        %v788 = vunpack.c.l.b16 %v712
        %v789 = vunpack.c.l.b16 %v713
        %v790 = vunpack.c.l.b16 %v714
        %v791 = vunpack.c.l.b16 %v715
        %v792 = vunpack.c.l.b16 %v716
        %v793 = vunpack.c.l.b16 %v717
        %v794 = vunpack.c.l.b16 %v718
        %v795 = vunpack.c.l.b16 %v719
        %v796 = vunpack.c.l.b16 %v720
        %v797 = vunpack.c.l.b16 %v721
        %v798 = vunpack.c.l.b16 %v722
        %v799 = vunpack.c.l.b16 %v723
        %v800 = vunpack.c.l.b16 %v724
        %v801 = vunpack.c.l.b16 %v725
        %v802 = vunpack.c.l.b16 %v726
        %v803 = vunpack.c.l.b16 %v727
        %v804 = vunpack.c.l.b16 %v728
        %v805 = vunpack.c.l.b16 %v729
        %v806 = vpack.c.b16 %v783, %v782
        %v807 = vpack.c.b16 %v785, %v784
        %v808 = vpack.c.b16 %v787, %v786
        %v809 = vpack.c.b16 %v789, %v788
        %v810 = vpack.c.b16 %v791, %v790
        %v811 = vpack.c.b16 %v793, %v792
        %v812 = vpack.c.b16 %v795, %v794
        %v813 = vpack.c.b16 %v797, %v796
        %v814 = vpack.c.b16 %v799, %v798
        %v815 = vpack.c.b16 %v801, %v800
        %v816 = vpack.c.b16 %v803, %v802
        %v817 = vpack.c.b16 %v805, %v804
        %v831 = vsel %vm402, %v747, 0
        %v834 = vsel %vm402, %v749, 0
        %v837 = vsel %vm402, %v751, 0
        %v840 = vsel %vm402, %v753, 0
        %842 = vmatprep.subr.bf16.mxu0 0
        %843 = vmatpush1.bf16.msra.mxu0 %v813
        %844 = vmatprep.subr.bf16.mxu0 0
        %845 = vmatpush1.bf16.msra.mxu0 %v812
        %846 = vmatprep.subr.bf16.mxu0 0
        %847 = vmatpush1.bf16.msra.mxu0 %v811
        %848 = vmatprep.subr.bf16.mxu0 0
        %849 = vmatpush1.bf16.msra.mxu0 %v810
        %850 = vmatprep.subr.bf16.mxu0 0
        %851 = vmatpush1.bf16.msra.mxu0 %v809
        %852 = vmatprep.subr.bf16.mxu0 0
        %853 = vmatpush1.bf16.msra.mxu0 %v808
        %854 = vmatprep.subr.bf16.mxu0 0
        %855 = vmatpush1.bf16.msra.mxu0 %v807
        %856 = vmatprep.subr.bf16.mxu0 0
        %857 = vmatpush1.bf16.msra.mxu0 %v806
        %858 = vmatprep.subr.bf16.mxu0 0
        %859 = vmatpush2.bf16.msra.mxu0 0
        %860 = vmatprep.subr.bf16.mxu0 0
        %861 = vmatpush2.bf16.msra.mxu0 0
        %862 = vmatprep.subr.bf16.mxu0 0
        %863 = vmatpush2.bf16.msra.mxu0 0
        %864 = vmatprep.subr.bf16.mxu0 0
        %865 = vmatpush2.bf16.msra.mxu0 0
        %866 = vmatprep.subr.bf16.mxu0 0
        %867 = vmatpush2.bf16.msra.mxu0 %v817
        %868 = vmatprep.subr.bf16.mxu0 0
        %869 = vmatpush2.bf16.msra.mxu0 %v816
        %870 = vmatprep.subr.bf16.mxu0 0
        %871 = vmatpush2.bf16.msra.mxu0 %v815
        %872 = vmatprep.subr.bf16.mxu0 0
        %873 = vmatpush2.bf16.msra.mxu0 %v814
        %874 = vmatprep.mubr.bf16.mxu0 %v831
        %875 = vmatmul.mubr.bf16.gmra.mxu0 %v746
        %v876 = vpop.f32.mrf.mxu0
        %v877 = vadd.f32 0.0, %v876
        %v878 = vpop.f32.mrf.mxu0
        %v879 = vpop.f32.mrf.mxu0
        %v880 = vadd.f32 0.0, %v879
        %v881 = vpop.f32.mrf.mxu0
        %882 = vmatprep.mubr.bf16.mxu0 %v834
        %883 = vmatmul.mubr.bf16.gmra.mxu0 %v748
        %v884 = vpop.f32.mrf.mxu0
        %v885 = vadd.f32 0.0, %v884
        %v886 = vpop.f32.mrf.mxu0
        %v887 = vpop.f32.mrf.mxu0
        %v888 = vadd.f32 0.0, %v887
        %v889 = vpop.f32.mrf.mxu0
        %890 = vmatprep.mubr.bf16.mxu0 %v837
        %891 = vmatmul.mubr.bf16.gmra.mxu0 %v750
        %v892 = vpop.f32.mrf.mxu0
        %v893 = vadd.f32 0.0, %v892
        %v894 = vpop.f32.mrf.mxu0
        %v895 = vpop.f32.mrf.mxu0
        %v896 = vadd.f32 0.0, %v895
        %v897 = vpop.f32.mrf.mxu0
        %898 = vmatprep.mubr.bf16.mxu0 %v840
        %899 = vmatmul.mubr.bf16.gmra.mxu0 %v752
        %v900 = vpop.f32.mrf.mxu0
        %v901 = vadd.f32 0.0, %v900
        %v902 = vpop.f32.mrf.mxu0
        %v903 = vpop.f32.mrf.mxu0
        %v904 = vadd.f32 0.0, %v903
        %v905 = vpop.f32.mrf.mxu0
        %906 = vdwg.mxu0
        %v907 = vpack.c.b16 %v437, %v436
        %v908 = vpack.c.b16 %v372, %v371
        %v909 = vpack.c.b16 %v439, %v438
        %v910 = vpack.c.b16 %v374, %v373
        %v911 = vpack.c.b16 %v441, %v440
        %v912 = vpack.c.b16 %v376, %v375
        %v913 = vpack.c.b16 %v443, %v442
        %v914 = vpack.c.b16 %v444, %v377
        %v943 = vunpack.c.l.b16 %v445
        %v944 = vunpack.c.l.b16 %v446
        %v945 = vunpack.c.l.b16 %v447
        %v946 = vunpack.c.l.b16 %v448
        %v947 = vunpack.c.l.b16 %v449
        %v948 = vunpack.c.l.b16 %v450
        %v949 = vunpack.c.l.b16 %v451
        %v950 = vunpack.c.l.b16 %v452
        %v951 = vunpack.c.l.b16 %v453
        %v952 = vunpack.c.l.b16 %v454
        %v953 = vunpack.c.l.b16 %v455
        %v954 = vunpack.c.l.b16 %v456
        %v955 = vunpack.c.l.b16 %v457
        %v956 = vunpack.c.l.b16 %v458
        %v957 = vunpack.c.l.b16 %v459
        %v958 = vunpack.c.l.b16 %v460
        %v959 = vunpack.c.l.b16 %v461
        %v960 = vunpack.c.l.b16 %v462
        %v961 = vunpack.c.l.b16 %v463
        %v962 = vunpack.c.l.b16 %v464
        %v963 = vunpack.c.l.b16 %v465
        %v964 = vunpack.c.l.b16 %v466
        %v965 = vunpack.c.l.b16 %v467
        %v966 = vunpack.c.l.b16 %v468
        %v967 = vpack.c.b16 %v944, %v943
        %v968 = vpack.c.b16 %v946, %v945
        %v969 = vpack.c.b16 %v948, %v947
        %v970 = vpack.c.b16 %v950, %v949
        %v971 = vpack.c.b16 %v952, %v951
        %v972 = vpack.c.b16 %v954, %v953
        %v973 = vpack.c.b16 %v956, %v955
        %v974 = vpack.c.b16 %v958, %v957
        %v975 = vpack.c.b16 %v960, %v959
        %v976 = vpack.c.b16 %v962, %v961
        %v977 = vpack.c.b16 %v964, %v963
        %v978 = vpack.c.b16 %v966, %v965
        %v992 = vsel %vm402, %v908, 0
        %v995 = vsel %vm402, %v910, 0
        %v998 = vsel %vm402, %v912, 0
        %v1001 = vsel %vm402, %v914, 0
        %1003 = vmatprep.subr.bf16.mxu0 0
        %1004 = vmatpush1.bf16.msra.mxu0 %v974
        %1005 = vmatprep.subr.bf16.mxu0 0
        %1006 = vmatpush1.bf16.msra.mxu0 %v973
        %1007 = vmatprep.subr.bf16.mxu0 0
        %1008 = vmatpush1.bf16.msra.mxu0 %v972
        %1009 = vmatprep.subr.bf16.mxu0 0
        %1010 = vmatpush1.bf16.msra.mxu0 %v971
        %1011 = vmatprep.subr.bf16.mxu0 0
        %1012 = vmatpush1.bf16.msra.mxu0 %v970
        %1013 = vmatprep.subr.bf16.mxu0 0
        %1014 = vmatpush1.bf16.msra.mxu0 %v969
        %1015 = vmatprep.subr.bf16.mxu0 0
        %1016 = vmatpush1.bf16.msra.mxu0 %v968
        %1017 = vmatprep.subr.bf16.mxu0 0
        %1018 = vmatpush1.bf16.msra.mxu0 %v967
        %1019 = vmatprep.subr.bf16.mxu0 0
        %1020 = vmatpush2.bf16.msra.mxu0 0
        %1021 = vmatprep.subr.bf16.mxu0 0
        %1022 = vmatpush2.bf16.msra.mxu0 0
        %1023 = vmatprep.subr.bf16.mxu0 0
        %1024 = vmatpush2.bf16.msra.mxu0 0
        %1025 = vmatprep.subr.bf16.mxu0 0
        %1026 = vmatpush2.bf16.msra.mxu0 0
        %1027 = vmatprep.subr.bf16.mxu0 0
        %1028 = vmatpush2.bf16.msra.mxu0 %v978
        %1029 = vmatprep.subr.bf16.mxu0 0
        %1030 = vmatpush2.bf16.msra.mxu0 %v977
        %1031 = vmatprep.subr.bf16.mxu0 0
        %1032 = vmatpush2.bf16.msra.mxu0 %v976
        %1033 = vmatprep.subr.bf16.mxu0 0
        %1034 = vmatpush2.bf16.msra.mxu0 %v975
        %1035 = vmatprep.mubr.bf16.mxu0 %v992
        %1036 = vmatmul.mubr.bf16.gmra.mxu0 %v907
        %v1037 = vpop.f32.mrf.mxu0
        %v1038 = vadd.f32 %v877, %v1037
        %v1039 = vpop.f32.mrf.mxu0
        %v1040 = vpop.f32.mrf.mxu0
        %v1041 = vadd.f32 %v880, %v1040
        %v1042 = vpop.f32.mrf.mxu0
        %1043 = vmatprep.mubr.bf16.mxu0 %v995
        %1044 = vmatmul.mubr.bf16.gmra.mxu0 %v909
        %v1045 = vpop.f32.mrf.mxu0
        %v1046 = vadd.f32 %v885, %v1045
        %v1047 = vpop.f32.mrf.mxu0
        %v1048 = vpop.f32.mrf.mxu0
        %v1049 = vadd.f32 %v888, %v1048
        %v1050 = vpop.f32.mrf.mxu0
        %1051 = vmatprep.mubr.bf16.mxu0 %v998
        %1052 = vmatmul.mubr.bf16.gmra.mxu0 %v911
        %v1053 = vpop.f32.mrf.mxu0
        %v1054 = vadd.f32 %v893, %v1053
        %v1055 = vpop.f32.mrf.mxu0
        %v1056 = vpop.f32.mrf.mxu0
        %v1057 = vadd.f32 %v896, %v1056
        %v1058 = vpop.f32.mrf.mxu0
        %1059 = vmatprep.mubr.bf16.mxu0 %v1001
        %1060 = vmatmul.mubr.bf16.gmra.mxu0 %v913
        %v1061 = vpop.f32.mrf.mxu0
        %v1062 = vadd.f32 %v901, %v1061
        %v1063 = vpop.f32.mrf.mxu0
        %v1064 = vpop.f32.mrf.mxu0
        %v1065 = vadd.f32 %v904, %v1064
        %v1066 = vpop.f32.mrf.mxu0
        %1067 = vdwg.mxu0
        %v1068 = vld [vmem:[%s345] sm:$0xe]
        %v1069 = vld [vmem:[%s345 + $0x8] sm:$0xe]
        %v1070 = vld [vmem:[%s345 + $0x10] sm:$0xe]
        %v1071 = vld [vmem:[%s345 + $0x18] sm:$0xe]
        %v1072 = vld [vmem:[%s345 + $0x20] sm:$0xe]
        %v1073 = vld [vmem:[%s345 + $0x28] sm:$0xe]
        %v1074 = vld [vmem:[%s345 + $0x30] sm:$0xe]
        %v1075 = vld [vmem:[%s345 + $0x38] sm:$0xe]
        %v1076 = vld [vmem:[%s345 + $0x40] sm:$0xe]
        %v1077 = vld [vmem:[%s345 + $0x48] sm:$0xe]
        %v1086 = vunpack.c.l.b16 %v1068
        %v1087 = vunpack.c.l.b16 %v1069
        %v1088 = vunpack.c.l.b16 %v1070
        %v1089 = vunpack.c.l.b16 %v1071
        %v1090 = vunpack.c.l.b16 %v1072
        %v1091 = vunpack.c.l.b16 %v1073
        %v1092 = vunpack.c.l.b16 %v1074
        %v1093 = vunpack.c.l.b16 %v1075
        %v1094 = vpack.c.b16 %v489, %v1086
        %v1095 = vpack.c.b16 %v490, %v1087
        %v1096 = vpack.c.b16 %v491, %v1088
        %v1097 = vpack.c.b16 %v492, %v1089
        %v1098 = vpack.c.b16 %v493, %v1090
        %v1099 = vpack.c.b16 %v494, %v1091
        %v1100 = vpack.c.b16 %v495, %v1092
        %v1101 = vpack.c.b16 %v496, %v1093
        %v1103 = vunpack.c.l.b16 %v1076
        %v1104 = vpack.c.b16 %v506, %v1103
        %1105 = vrot.lane.b32.xlu0 %v1095, 64
        %v1106 = vpop.permute.xlu0 %1105
        %1107 = vrot.lane.b32.xlu0 %v1096, 64
        %v1108 = vpop.permute.xlu0 %1107
        %1109 = vrot.lane.b32.xlu0 %v1097, 64
        %v1110 = vpop.permute.xlu0 %1109
        %1111 = vrot.lane.b32.xlu0 %v1098, 64
        %v1112 = vpop.permute.xlu0 %1111
        %1113 = vrot.lane.b32.xlu0 %v1099, 64
        %v1114 = vpop.permute.xlu0 %1113
        %1115 = vrot.lane.b32.xlu0 %v1100, 64
        %v1116 = vpop.permute.xlu0 %1115
        %1117 = vrot.lane.b32.xlu0 %v1101, 64
        %v1118 = vpop.permute.xlu0 %1117
        %1119 = vrot.lane.b32.xlu0 %v1104, 64
        %v1120 = vpop.permute.xlu0 %1119
        %v1122 = vunpack.c.l.b16 %v1077
        %v1125 = vsel %vm402, %v1094, %v1106
        %v1128 = vsel %vm402, %v1095, %v1108
        %v1131 = vsel %vm402, %v1096, %v1110
        %v1134 = vsel %vm402, %v1097, %v1112
        %v1137 = vsel %vm402, %v1098, %v1114
        %v1140 = vsel %vm402, %v1099, %v1116
        %v1143 = vsel %vm402, %v1100, %v1118
        %v1146 = vsel %vm402, %v1101, %v1120
        %v1155 = vunpack.c.l.b16 %v1125
        %v1156 = vunpack.c.h.b16 %v1125
        %v1157 = vunpack.c.l.b16 %v1128
        %v1158 = vunpack.c.h.b16 %v1128
        %v1159 = vunpack.c.l.b16 %v1131
        %v1160 = vunpack.c.h.b16 %v1131
        %v1161 = vunpack.c.l.b16 %v1134
        %v1162 = vunpack.c.h.b16 %v1134
        %v1163 = vunpack.c.l.b16 %v1137
        %v1164 = vunpack.c.h.b16 %v1137
        %v1165 = vunpack.c.l.b16 %v1140
        %v1166 = vunpack.c.h.b16 %v1140
        %v1167 = vunpack.c.l.b16 %v1143
        %v1168 = vunpack.c.h.b16 %v1143
        %v1169 = vunpack.c.l.b16 %v1146
        %v1170 = vunpack.c.h.b16 %v1146
        %v1171 = vpack.c.b16 %v1088, %v1155
        %v1172 = vpack.c.b16 %v491, %v1156
        %v1173 = vpack.c.b16 %v1089, %v1157
        %v1174 = vpack.c.b16 %v492, %v1158
        %v1175 = vpack.c.b16 %v1090, %v1159
        %v1176 = vpack.c.b16 %v493, %v1160
        %v1177 = vpack.c.b16 %v1091, %v1161
        %v1178 = vpack.c.b16 %v494, %v1162
        %v1179 = vpack.c.b16 %v1092, %v1163
        %v1180 = vpack.c.b16 %v495, %v1164
        %v1181 = vpack.c.b16 %v1093, %v1165
        %v1182 = vpack.c.b16 %v496, %v1166
        %v1183 = vpack.c.b16 %v1103, %v1167
        %v1184 = vpack.c.b16 %v506, %v1168
        %v1185 = vpack.c.b16 %v1122, %v1169
        %v1186 = vpack.c.b16 %v525, %v1170
        %vm1187 = vcmask 1042432
        %vm1188 = vcmask 1046532
        %vm1189 = vmor %vm1187, %vm1188
        %v1190 = vrot.slane %v1171, 5
        %v1191 = vrot.slane %v1190, 4
        %v1192 = vrot.slane %v1172, 5
        %v1193 = vsel %vm1189, %v1191, %v1192
        %v1194 = vrot.slane %v1173, 5
        %v1195 = vrot.slane %v1194, 4
        %v1196 = vrot.slane %v1174, 5
        %v1197 = vsel %vm1189, %v1195, %v1196
        %v1198 = vrot.slane %v1175, 5
        %v1199 = vrot.slane %v1198, 4
        %v1200 = vrot.slane %v1176, 5
        %v1201 = vsel %vm1189, %v1199, %v1200
        %v1202 = vrot.slane %v1177, 5
        %v1203 = vrot.slane %v1202, 4
        %v1204 = vrot.slane %v1178, 5
        %v1205 = vsel %vm1189, %v1203, %v1204
        %v1206 = vrot.slane %v1179, 5
        %v1207 = vrot.slane %v1206, 4
        %v1208 = vrot.slane %v1180, 5
        %v1209 = vsel %vm1189, %v1207, %v1208
        %v1210 = vrot.slane %v1181, 5
        %v1211 = vrot.slane %v1210, 4
        %v1212 = vrot.slane %v1182, 5
        %v1213 = vsel %vm1189, %v1211, %v1212
        %v1214 = vrot.slane %v1183, 5
        %v1215 = vrot.slane %v1214, 4
        %v1216 = vrot.slane %v1184, 5
        %v1217 = vsel %vm1189, %v1215, %v1216
        %v1218 = vrot.slane %v1185, 5
        %v1219 = vrot.slane %v1218, 4
        %v1220 = vrot.slane %v1186, 5
        %v1221 = vsel %vm1189, %v1219, %v1220
        %s1222 = scalar_lea.vmem %s2, 192
        %v1223 = vld [vmem:[%s1222] sm:$0xf]
        %v1224 = vld [vmem:[%s1222 + $0x4] sm:$0xf]
        %v1225 = vld [vmem:[%s1222 + $0x8] sm:$0xf]
        %v1226 = vld [vmem:[%s1222 + $0xc] sm:$0xf]
        %v1227 = vld [vmem:[%s1222 + $0x10] sm:$0xf]
        %v1228 = vld [vmem:[%s1222 + $0x14] sm:$0xf]
        %v1229 = vld [vmem:[%s1222 + $0x18] sm:$0xf]
        %v1230 = vld [vmem:[%s1222 + $0x1c] sm:$0xf]
        %v1231 = vld [vmem:[%s1222 + $0x20] sm:$0xf]
        %v1232 = vld [vmem:[%s1222 + $0x24] sm:$0xf]
        %v1233 = vld [vmem:[%s1222 + $0x28] sm:$0xf]
        %v1234 = vld [vmem:[%s1222 + $0x2c] sm:$0xf]
        %v1235 = vld [vmem:[%s1222 + $0x30] sm:$0xf]
        %v1236 = vld [vmem:[%s1222 + $0x34] sm:$0xf]
        %v1237 = vld [vmem:[%s1222 + $0x38] sm:$0xf]
        %v1238 = vld [vmem:[%s1222 + $0x3c] sm:$0xf]
        %v1239 = vld [vmem:[%s1222 + $0x40] sm:$0xf]
        %v1240 = vld [vmem:[%s1222 + $0x44] sm:$0xf]
        %v1241 = vld [vmem:[%s1222 + $0x48] sm:$0xf]
        %v1242 = vld [vmem:[%s1222 + $0x4c] sm:$0xf]
        %v1243 = vld [vmem:[%s1222 + $0x50] sm:$0xf]
        %v1244 = vld [vmem:[%s1222 + $0x54] sm:$0xf]
        %v1245 = vld [vmem:[%s1222 + $0x58] sm:$0xf]
        %v1246 = vld [vmem:[%s1222 + $0x5c] sm:$0xf]
        %v1247 = vunpack.c.l.b16 %v1193
        %v1248 = vunpack.c.h.b16 %v1193
        %v1249 = vunpack.c.l.b16 %v1197
        %v1250 = vunpack.c.h.b16 %v1197
        %v1251 = vunpack.c.l.b16 %v1201
        %v1252 = vunpack.c.h.b16 %v1201
        %v1253 = vunpack.c.l.b16 %v1205
        %v1254 = vunpack.c.h.b16 %v1205
        %v1255 = vunpack.c.l.b16 %v1209
        %v1256 = vunpack.c.h.b16 %v1209
        %v1257 = vunpack.c.l.b16 %v1213
        %v1258 = vunpack.c.h.b16 %v1213
        %v1259 = vunpack.c.l.b16 %v1217
        %v1260 = vunpack.c.h.b16 %v1217
        %v1261 = vunpack.c.l.b16 %v1221
        %v1262 = vunpack.c.h.b16 %v1221
        %v1263 = vpack.c.b16 %v1249, %v1247
        %v1264 = vpack.c.b16 %v1250, %v1248
        %v1265 = vpack.c.b16 %v1253, %v1251
        %v1266 = vpack.c.b16 %v1254, %v1252
        %v1267 = vpack.c.b16 %v1257, %v1255
        %v1268 = vpack.c.b16 %v1258, %v1256
        %v1269 = vpack.c.b16 %v1261, %v1259
        %v1270 = vpack.c.b16 %v1262, %v1260
        %v1299 = vunpack.c.l.b16 %v1223
        %v1300 = vunpack.c.l.b16 %v1224
        %v1301 = vunpack.c.l.b16 %v1225
        %v1302 = vunpack.c.l.b16 %v1226
        %v1303 = vunpack.c.l.b16 %v1227
        %v1304 = vunpack.c.l.b16 %v1228
        %v1305 = vunpack.c.l.b16 %v1229
        %v1306 = vunpack.c.l.b16 %v1230
        %v1307 = vunpack.c.l.b16 %v1231
        %v1308 = vunpack.c.l.b16 %v1232
        %v1309 = vunpack.c.l.b16 %v1233
        %v1310 = vunpack.c.l.b16 %v1234
        %v1311 = vunpack.c.l.b16 %v1235
        %v1312 = vunpack.c.l.b16 %v1236
        %v1313 = vunpack.c.l.b16 %v1237
        %v1314 = vunpack.c.l.b16 %v1238
        %v1315 = vunpack.c.l.b16 %v1239
        %v1316 = vunpack.c.l.b16 %v1240
        %v1317 = vunpack.c.l.b16 %v1241
        %v1318 = vunpack.c.l.b16 %v1242
        %v1319 = vunpack.c.l.b16 %v1243
        %v1320 = vunpack.c.l.b16 %v1244
        %v1321 = vunpack.c.l.b16 %v1245
        %v1322 = vunpack.c.l.b16 %v1246
        %v1323 = vpack.c.b16 %v1300, %v1299
        %v1324 = vpack.c.b16 %v1302, %v1301
        %v1325 = vpack.c.b16 %v1304, %v1303
        %v1326 = vpack.c.b16 %v1306, %v1305
        %v1327 = vpack.c.b16 %v1308, %v1307
        %v1328 = vpack.c.b16 %v1310, %v1309
        %v1329 = vpack.c.b16 %v1312, %v1311
        %v1330 = vpack.c.b16 %v1314, %v1313
        %v1331 = vpack.c.b16 %v1316, %v1315
        %v1332 = vpack.c.b16 %v1318, %v1317
        %v1333 = vpack.c.b16 %v1320, %v1319
        %v1334 = vpack.c.b16 %v1322, %v1321
        %v1348 = vsel %vm402, %v1264, 0
        %v1351 = vsel %vm402, %v1266, 0
        %v1354 = vsel %vm402, %v1268, 0
        %v1357 = vsel %vm402, %v1270, 0
        %1359 = vmatprep.subr.bf16.mxu0 0
        %1360 = vmatpush1.bf16.msra.mxu0 %v1330
        %1361 = vmatprep.subr.bf16.mxu0 0
        %1362 = vmatpush1.bf16.msra.mxu0 %v1329
        %1363 = vmatprep.subr.bf16.mxu0 0
        %1364 = vmatpush1.bf16.msra.mxu0 %v1328
        %1365 = vmatprep.subr.bf16.mxu0 0
        %1366 = vmatpush1.bf16.msra.mxu0 %v1327
        %1367 = vmatprep.subr.bf16.mxu0 0
        %1368 = vmatpush1.bf16.msra.mxu0 %v1326
        %1369 = vmatprep.subr.bf16.mxu0 0
        %1370 = vmatpush1.bf16.msra.mxu0 %v1325
        %1371 = vmatprep.subr.bf16.mxu0 0
        %1372 = vmatpush1.bf16.msra.mxu0 %v1324
        %1373 = vmatprep.subr.bf16.mxu0 0
        %1374 = vmatpush1.bf16.msra.mxu0 %v1323
        %1375 = vmatprep.subr.bf16.mxu0 0
        %1376 = vmatpush2.bf16.msra.mxu0 0
        %1377 = vmatprep.subr.bf16.mxu0 0
        %1378 = vmatpush2.bf16.msra.mxu0 0
        %1379 = vmatprep.subr.bf16.mxu0 0
        %1380 = vmatpush2.bf16.msra.mxu0 0
        %1381 = vmatprep.subr.bf16.mxu0 0
        %1382 = vmatpush2.bf16.msra.mxu0 0
        %1383 = vmatprep.subr.bf16.mxu0 0
        %1384 = vmatpush2.bf16.msra.mxu0 %v1334
        %1385 = vmatprep.subr.bf16.mxu0 0
        %1386 = vmatpush2.bf16.msra.mxu0 %v1333
        %1387 = vmatprep.subr.bf16.mxu0 0
        %1388 = vmatpush2.bf16.msra.mxu0 %v1332
        %1389 = vmatprep.subr.bf16.mxu0 0
        %1390 = vmatpush2.bf16.msra.mxu0 %v1331
        %1391 = vmatprep.mubr.bf16.mxu0 %v1348
        %1392 = vmatmul.mubr.bf16.gmra.mxu0 %v1263
        %v1393 = vpop.f32.mrf.mxu0
        %v1394 = vadd.f32 0.0, %v1393
        %v1395 = vpop.f32.mrf.mxu0
        %v1396 = vpop.f32.mrf.mxu0
        %v1397 = vadd.f32 0.0, %v1396
        %v1398 = vpop.f32.mrf.mxu0
        %1399 = vmatprep.mubr.bf16.mxu0 %v1351
        %1400 = vmatmul.mubr.bf16.gmra.mxu0 %v1265
        %v1401 = vpop.f32.mrf.mxu0
        %v1402 = vadd.f32 0.0, %v1401
        %v1403 = vpop.f32.mrf.mxu0
        %v1404 = vpop.f32.mrf.mxu0
        %v1405 = vadd.f32 0.0, %v1404
        %v1406 = vpop.f32.mrf.mxu0
        %1407 = vmatprep.mubr.bf16.mxu0 %v1354
        %1408 = vmatmul.mubr.bf16.gmra.mxu0 %v1267
        %v1409 = vpop.f32.mrf.mxu0
        %v1410 = vadd.f32 0.0, %v1409
        %v1411 = vpop.f32.mrf.mxu0
        %v1412 = vpop.f32.mrf.mxu0
        %v1413 = vadd.f32 0.0, %v1412
        %v1414 = vpop.f32.mrf.mxu0
        %1415 = vmatprep.mubr.bf16.mxu0 %v1357
        %1416 = vmatmul.mubr.bf16.gmra.mxu0 %v1269
        %v1417 = vpop.f32.mrf.mxu0
        %v1418 = vadd.f32 0.0, %v1417
        %v1419 = vpop.f32.mrf.mxu0
        %v1420 = vpop.f32.mrf.mxu0
        %v1421 = vadd.f32 0.0, %v1420
        %v1422 = vpop.f32.mrf.mxu0
        %1423 = vdwg.mxu0
        %v1424 = vadd.f32 %v1038, %v1394
        %v1425 = vadd.f32 %v1041, %v1397
        %v1426 = vadd.f32 %v1046, %v1402
        %v1427 = vadd.f32 %v1049, %v1405
        %v1428 = vadd.f32 %v1054, %v1410
        %v1429 = vadd.f32 %v1057, %v1413
        %v1430 = vadd.f32 %v1062, %v1418
        %v1431 = vadd.f32 %v1065, %v1421
        %v1432 = vsel %vm402, %v1424, 0.0
        %v1433 = vsel %vm402, %v1425, 0.0
        %v1434 = vadd.f32 %v1432, %v1433
        %v1435 = vsel %vm402, %v1426, 0.0
        %v1436 = vadd.f32 %v1434, %v1435
        %v1437 = vsel %vm402, %v1427, 0.0
        %v1438 = vadd.f32 %v1436, %v1437
        %v1439 = vsel %vm402, %v1428, 0.0
        %v1440 = vadd.f32 %v1438, %v1439
        %v1441 = vsel %vm402, %v1429, 0.0
        %v1442 = vadd.f32 %v1440, %v1441
        %v1443 = vsel %vm402, %v1430, 0.0
        %v1444 = vadd.f32 %v1442, %v1443
        %v1445 = vsel %vm402, %v1431, 0.0
        %v1446 = vadd.f32 %v1444, %v1445
        %v1447 = vrot.slane %v1446, 4
        %v1448 = vadd.f32 %v1446, %v1447
        %v1449 = vrot.slane %v1448, 2
        %v1450 = vadd.f32 %v1448, %v1449
        %v1451 = vrot.slane %v1450, 1
        %v1452 = vadd.f32 %v1450, %v1451
        %v1453 = vmul.f32 %v1424, %v1424
        %v1454 = vmul.f32 %v1425, %v1425
        %v1455 = vmul.f32 %v1426, %v1426
        %v1456 = vmul.f32 %v1427, %v1427
        %v1457 = vmul.f32 %v1428, %v1428
        %v1458 = vmul.f32 %v1429, %v1429
        %v1459 = vmul.f32 %v1430, %v1430
        %v1460 = vmul.f32 %v1431, %v1431
        %v1461 = vsel %vm402, %v1453, 0.0
        %v1462 = vsel %vm402, %v1454, 0.0
        %v1463 = vadd.f32 %v1461, %v1462
        %v1464 = vsel %vm402, %v1455, 0.0
        %v1465 = vadd.f32 %v1463, %v1464
        %v1466 = vsel %vm402, %v1456, 0.0
        %v1467 = vadd.f32 %v1465, %v1466
        %v1468 = vsel %vm402, %v1457, 0.0
        %v1469 = vadd.f32 %v1467, %v1468
        %v1470 = vsel %vm402, %v1458, 0.0
        %v1471 = vadd.f32 %v1469, %v1470
        %v1472 = vsel %vm402, %v1459, 0.0
        %v1473 = vadd.f32 %v1471, %v1472
        %v1474 = vsel %vm402, %v1460, 0.0
        %v1475 = vadd.f32 %v1473, %v1474
        %v1476 = vrot.slane %v1475, 4
        %v1477 = vadd.f32 %v1475, %v1476
        %v1478 = vrot.slane %v1477, 2
        %v1479 = vadd.f32 %v1477, %v1478
        %v1480 = vrot.slane %v1479, 1
        %v1481 = vadd.f32 %v1479, %v1480
        %vm1482 = vcmask 1040384
        %v1483 = vsel %vm1482, %v1452, %v1481
        %v1484 = vld [vmem:[%s8] sm:$0xff]
        %v1485 = vld [vmem:[%s8 + $0x8] sm:$0xff]
        %v1486 = vld [vmem:[%s8 + $0x10] sm:$0xff]
        %v1487 = vld [vmem:[%s8 + $0x18] sm:$0xff]
        %v1488 = vld [vmem:[%s8 + $0x20] sm:$0xff]
        %v1489 = vld [vmem:[%s8 + $0x28] sm:$0xff]
        %v1490 = vld [vmem:[%s8 + $0x30] sm:$0xff]
        %v1491 = vld [vmem:[%s8 + $0x38] sm:$0xff]
        %v1493 = vsel %vm402, %v1483, 0
        %1495 = vmatprep.subr.mxu0 0.0
        %1496 = vmatpush1.msra.mxu0 0.0
        %1497 = vmatprep.subr.mxu0 0.0
        %1498 = vmatpush1.msra.mxu0 0.0
        %1499 = vmatprep.subr.mxu0 0.0
        %1500 = vmatpush1.msra.mxu0 0.0
        %1501 = vmatprep.subr.mxu0 0.0
        %1502 = vmatpush1.msra.mxu0 0.0
        %1503 = vmatprep.subr.mxu0 0.0
        %1504 = vmatpush1.msra.mxu0 0.0
        %1505 = vmatprep.subr.mxu0 0.0
        %1506 = vmatpush1.msra.mxu0 0.0
        %1507 = vmatprep.subr.mxu0 0.0
        %1508 = vmatpush1.msra.mxu0 0.0
        %1509 = vmatprep.subr.mxu0 0.0
        %1510 = vmatpush1.msra.mxu0 0.0
        %1511 = vmatprep.subr.mxu0 0.0
        %1512 = vmatpush1.msra.mxu0 %v1491
        %1513 = vmatprep.subr.mxu0 0.0
        %1514 = vmatpush1.msra.mxu0 %v1490
        %1515 = vmatprep.subr.mxu0 0.0
        %1516 = vmatpush1.msra.mxu0 %v1489
        %1517 = vmatprep.subr.mxu0 0.0
        %1518 = vmatpush1.msra.mxu0 %v1488
        %1519 = vmatprep.subr.mxu0 0.0
        %1520 = vmatpush1.msra.mxu0 %v1487
        %1521 = vmatprep.subr.mxu0 0.0
        %1522 = vmatpush1.msra.mxu0 %v1486
        %1523 = vmatprep.subr.mxu0 0.0
        %1524 = vmatpush1.msra.mxu0 %v1485
        %1525 = vmatprep.subr.mxu0 0.0
        %1526 = vmatpush1.msra.mxu0 %v1484
        %1527 = vmatprep.subr.mxu0 0.0
        %1528 = vmatpush2.msra.mxu0 0.0
        %1529 = vmatprep.subr.mxu0 0.0
        %1530 = vmatpush2.msra.mxu0 0.0
        %1531 = vmatprep.subr.mxu0 0.0
        %1532 = vmatpush2.msra.mxu0 0.0
        %1533 = vmatprep.subr.mxu0 0.0
        %1534 = vmatpush2.msra.mxu0 0.0
        %1535 = vmatprep.subr.mxu0 0.0
        %1536 = vmatpush2.msra.mxu0 0.0
        %1537 = vmatprep.subr.mxu0 0.0
        %1538 = vmatpush2.msra.mxu0 0.0
        %1539 = vmatprep.subr.mxu0 0.0
        %1540 = vmatpush2.msra.mxu0 0.0
        %1541 = vmatprep.subr.mxu0 0.0
        %1542 = vmatpush2.msra.mxu0 0.0
        %1543 = vmatprep.subr.mxu0 0.0
        %1544 = vmatpush2.msra.mxu0 0.0
        %1545 = vmatprep.subr.mxu0 0.0
        %1546 = vmatpush2.msra.mxu0 0.0
        %1547 = vmatprep.subr.mxu0 0.0
        %1548 = vmatpush2.msra.mxu0 0.0
        %1549 = vmatprep.subr.mxu0 0.0
        %1550 = vmatpush2.msra.mxu0 0.0
        %1551 = vmatprep.subr.mxu0 0.0
        %1552 = vmatpush2.msra.mxu0 0.0
        %1553 = vmatprep.subr.mxu0 0.0
        %1554 = vmatpush2.msra.mxu0 0.0
        %1555 = vmatprep.subr.mxu0 0.0
        %1556 = vmatpush2.msra.mxu0 0.0
        %1557 = vmatprep.subr.mxu0 0.0
        %1558 = vmatpush2.msra.mxu0 0.0
        %1559 = vmatprep.mubr.f32.mxu0 0.0
        %1560 = vmatmul.mubr.f32.gmra.mxu0 %v1493
        %v1561 = vpop.f32.mrf.mxu0
        %v1562 = vadd.f32 0.0, %v1561
        %v1563 = vpop.f32.mrf.mxu0
        %1564 = vdwg.mxu0
        %v1565 = vmul.f32 %v1562, %v1562
        %v1567 = vrot.slane %v1565, 7
        %v1569 = vsub.f32 %v1562, %v1567
        %v1570 = vmax.f32 %v1569, 0.0
        %v1571 = vadd.f32 %v1570, 1e-05
        %v1572 = vrsqrt.pop %v1571
        %v1573 = vlaneseq
        %v1574 = vshrl.u32 %v1573, 7
        %v1575 = vsub.s32 0, %v1574
        %v1576 = vrot.slane %v1562, %v1575
        %v1577 = vsub.f32 %v1424, %v1576
        %v1578 = vsub.f32 %v1425, %v1576
        %v1579 = vsub.f32 %v1426, %v1576
        %v1580 = vsub.f32 %v1427, %v1576
        %v1581 = vsub.f32 %v1428, %v1576
        %v1582 = vsub.f32 %v1429, %v1576
        %v1583 = vsub.f32 %v1430, %v1576
        %v1584 = vsub.f32 %v1431, %v1576
        %v1585 = vlaneseq
        %v1586 = vshrl.u32 %v1585, 7
        %v1587 = vsub.s32 1, %v1586
        %v1588 = vrot.slane %v1572, %v1587
        %v1589 = vmul.f32 %v1577, %v1588
        %v1590 = vmul.f32 %v1578, %v1588
        %v1591 = vmul.f32 %v1579, %v1588
        %v1592 = vmul.f32 %v1580, %v1588
        %v1593 = vmul.f32 %v1581, %v1588
        %v1594 = vmul.f32 %v1582, %v1588
        %v1595 = vmul.f32 %v1583, %v1588
        %v1596 = vmul.f32 %v1584, %v1588
        %v1597 = vld [vmem:[%s3] sm:$0x1]
        %v1599 = vlaneseq
        %v1600 = vshrl.u32 %v1599, 7
        %v1601 = vsub.s32 0, %v1600
        %v1602 = vrot.slane %v1597, %v1601
        %v1604 = vmul.f32 %v1589, %v1602
        %v1605 = vmul.f32 %v1590, %v1602
        %v1606 = vmul.f32 %v1591, %v1602
        %v1607 = vmul.f32 %v1592, %v1602
        %v1608 = vmul.f32 %v1593, %v1602
        %v1609 = vmul.f32 %v1594, %v1602
        %v1610 = vmul.f32 %v1595, %v1602
        %v1611 = vmul.f32 %v1596, %v1602
        %v1612 = vld [vmem:[%s4] sm:$0x1]
        %v1614 = vlaneseq
        %v1615 = vshrl.u32 %v1614, 7
        %v1616 = vsub.s32 0, %v1615
        %v1617 = vrot.slane %v1612, %v1616
        %v1619 = vadd.f32 %v1604, %v1617
        %v1620 = vadd.f32 %v1605, %v1617
        %v1621 = vadd.f32 %v1606, %v1617
        %v1622 = vadd.f32 %v1607, %v1617
        %v1623 = vadd.f32 %v1608, %v1617
        %v1624 = vadd.f32 %v1609, %v1617
        %v1625 = vadd.f32 %v1610, %v1617
        %v1626 = vadd.f32 %v1611, %v1617
        %v1627 = vmax.f32 %v1619, 0.0
        %v1628 = vmax.f32 %v1620, 0.0
        %v1629 = vmax.f32 %v1621, 0.0
        %v1630 = vmax.f32 %v1622, 0.0
        %v1631 = vmax.f32 %v1623, 0.0
        %v1632 = vmax.f32 %v1624, 0.0
        %v1633 = vmax.f32 %v1625, 0.0
        %v1634 = vmax.f32 %v1626, 0.0
        %v1635 = vpack.c.bf16 %v1627, %v1627
        %v1636 = vpack.c.bf16 %v1628, %v1628
        %v1637 = vpack.c.bf16 %v1629, %v1629
        %v1638 = vpack.c.bf16 %v1630, %v1630
        %v1639 = vpack.c.bf16 %v1631, %v1631
        %v1640 = vpack.c.bf16 %v1632, %v1632
        %v1641 = vpack.c.bf16 %v1633, %v1633
        %v1642 = vpack.c.bf16 %v1634, %v1634
        %v1644 = vshrl.u32 0, 16
        %v1646 = vrot.slane %v1644, 7
        %v1647 = vshll.u32 0, 16
        %v1649 = vor.u32 %v1646, %v1647
        %v1651 = vshrl.u32 %v1635, 16
        %v1653 = vrot.slane %v1651, 7
        %v1654 = vshll.u32 %v1635, 16
        %v1656 = vor.u32 %v1653, %v1654
        %v1658 = vshrl.u32 %v1636, 16
        %v1660 = vrot.slane %v1658, 7
        %v1661 = vshll.u32 %v1636, 16
        %v1663 = vor.u32 %v1660, %v1661
        %v1665 = vshrl.u32 %v1637, 16
        %v1667 = vrot.slane %v1665, 7
        %v1668 = vshll.u32 %v1637, 16
        %v1670 = vor.u32 %v1667, %v1668
        %v1672 = vshrl.u32 %v1638, 16
        %v1674 = vrot.slane %v1672, 7
        %v1675 = vshll.u32 %v1638, 16
        %v1677 = vor.u32 %v1674, %v1675
        %v1679 = vshrl.u32 %v1639, 16
        %v1681 = vrot.slane %v1679, 7
        %v1682 = vshll.u32 %v1639, 16
        %v1684 = vor.u32 %v1681, %v1682
        %v1686 = vshrl.u32 %v1640, 16
        %v1688 = vrot.slane %v1686, 7
        %v1689 = vshll.u32 %v1640, 16
        %v1691 = vor.u32 %v1688, %v1689
        %v1693 = vshrl.u32 %v1641, 16
        %v1695 = vrot.slane %v1693, 7
        %v1696 = vshll.u32 %v1641, 16
        %v1698 = vor.u32 %v1695, %v1696
        %v1700 = vshrl.u32 %v1642, 16
        %v1702 = vrot.slane %v1700, 7
        %v1703 = vshll.u32 %v1642, 16
        %v1705 = vor.u32 %v1702, %v1703
        %vm1715 = vcmask 1040384
        %vm1716 = vsmask.f32 256
        %vm1717 = vmand %vm1715, %vm1716
        %v1718 = vsel %vm1717, 0, %v1649
        %v1719 = vsel %vm1717, 0, %v1656
        %v1720 = vsel %vm1717, 0, %v1663
        %v1721 = vsel %vm1717, 0, %v1670
        %v1722 = vsel %vm1717, 0, %v1677
        %v1723 = vsel %vm1717, 0, %v1684
        %v1724 = vsel %vm1717, 0, %v1691
        %v1725 = vsel %vm1717, 0, %v1698
        %v1726 = vsel %vm1717, 0, %v1705
        %1735 = vrot.lane.b32.xlu0 %v1719, 64
        %v1736 = vpop.permute.xlu0 %1735
        %1737 = vrot.lane.b32.xlu0 %v1720, 64
        %v1738 = vpop.permute.xlu0 %1737
        %1739 = vrot.lane.b32.xlu0 %v1721, 64
        %v1740 = vpop.permute.xlu0 %1739
        %1741 = vrot.lane.b32.xlu0 %v1722, 64
        %v1742 = vpop.permute.xlu0 %1741
        %1743 = vrot.lane.b32.xlu0 %v1723, 64
        %v1744 = vpop.permute.xlu0 %1743
        %1745 = vrot.lane.b32.xlu0 %v1724, 64
        %v1746 = vpop.permute.xlu0 %1745
        %1747 = vrot.lane.b32.xlu0 %v1725, 64
        %v1748 = vpop.permute.xlu0 %1747
        %1749 = vrot.lane.b32.xlu0 %v1726, 64
        %v1750 = vpop.permute.xlu0 %1749
        %v1753 = vsel %vm402, %v1718, %v1736
        %v1756 = vsel %vm402, %v1719, %v1738
        %v1759 = vsel %vm402, %v1720, %v1740
        %v1762 = vsel %vm402, %v1721, %v1742
        %v1765 = vsel %vm402, %v1722, %v1744
        %v1768 = vsel %vm402, %v1723, %v1746
        %v1771 = vsel %vm402, %v1724, %v1748
        %v1774 = vsel %vm402, %v1725, %v1750
        %v1784 = vunpack.c.l.b16 %v1753
        %v1785 = vunpack.c.l.b16 %v1720
        %v1786 = vunpack.c.l.b16 %v1756
        %v1787 = vunpack.c.l.b16 %v1721
        %v1788 = vunpack.c.l.b16 %v1759
        %v1789 = vunpack.c.l.b16 %v1722
        %v1790 = vunpack.c.l.b16 %v1762
        %v1791 = vunpack.c.l.b16 %v1723
        %v1792 = vunpack.c.l.b16 %v1765
        %v1793 = vunpack.c.l.b16 %v1724
        %v1794 = vunpack.c.l.b16 %v1768
        %v1795 = vunpack.c.l.b16 %v1725
        %v1796 = vunpack.c.l.b16 %v1771
        %v1797 = vunpack.c.l.b16 %v1726
        %v1798 = vunpack.c.l.b16 %v1774
        %v1799 = vunpack.c.l.b16 %v1718
        %v1800 = vld [vmem:[%s5] sm:$0xf]
        %v1801 = vld [vmem:[%s5 + $0x4] sm:$0xf]
        %v1802 = vld [vmem:[%s5 + $0x8] sm:$0xf]
        %v1803 = vld [vmem:[%s5 + $0xc] sm:$0xf]
        %v1804 = vld [vmem:[%s5 + $0x10] sm:$0xf]
        %v1805 = vld [vmem:[%s5 + $0x14] sm:$0xf]
        %v1806 = vld [vmem:[%s5 + $0x18] sm:$0xf]
        %v1807 = vld [vmem:[%s5 + $0x1c] sm:$0xf]
        %v1808 = vld [vmem:[%s5 + $0x20] sm:$0xf]
        %v1809 = vld [vmem:[%s5 + $0x24] sm:$0xf]
        %v1810 = vld [vmem:[%s5 + $0x28] sm:$0xf]
        %v1811 = vld [vmem:[%s5 + $0x2c] sm:$0xf]
        %v1812 = vld [vmem:[%s5 + $0x30] sm:$0xf]
        %v1813 = vld [vmem:[%s5 + $0x34] sm:$0xf]
        %v1814 = vld [vmem:[%s5 + $0x38] sm:$0xf]
        %v1815 = vld [vmem:[%s5 + $0x3c] sm:$0xf]
        %v1816 = vld [vmem:[%s5 + $0x40] sm:$0xf]
        %v1817 = vld [vmem:[%s5 + $0x44] sm:$0xf]
        %v1818 = vld [vmem:[%s5 + $0x48] sm:$0xf]
        %v1819 = vld [vmem:[%s5 + $0x4c] sm:$0xf]
        %v1820 = vld [vmem:[%s5 + $0x50] sm:$0xf]
        %v1821 = vld [vmem:[%s5 + $0x54] sm:$0xf]
        %v1822 = vld [vmem:[%s5 + $0x58] sm:$0xf]
        %v1823 = vld [vmem:[%s5 + $0x5c] sm:$0xf]
        %1832 = vrot.lane.b32.xlu0 %v1635, 64
        %v1833 = vpop.permute.xlu0 %1832
        %1834 = vrot.lane.b32.xlu0 %v1636, 64
        %v1835 = vpop.permute.xlu0 %1834
        %1836 = vrot.lane.b32.xlu0 %v1637, 64
        %v1837 = vpop.permute.xlu0 %1836
        %1838 = vrot.lane.b32.xlu0 %v1638, 64
        %v1839 = vpop.permute.xlu0 %1838
        %1840 = vrot.lane.b32.xlu0 %v1639, 64
        %v1841 = vpop.permute.xlu0 %1840
        %1842 = vrot.lane.b32.xlu0 %v1640, 64
        %v1843 = vpop.permute.xlu0 %1842
        %1844 = vrot.lane.b32.xlu0 %v1641, 64
        %v1845 = vpop.permute.xlu0 %1844
        %1846 = vrot.lane.b32.xlu0 %v1642, 64
        %v1847 = vpop.permute.xlu0 %1846
        %v1849 = vsel %vm402, 0, %v1833
        %v1851 = vsel %vm402, %v1635, %v1835
        %v1853 = vsel %vm402, %v1636, %v1837
        %v1855 = vsel %vm402, %v1637, %v1839
        %v1857 = vsel %vm402, %v1638, %v1841
        %v1859 = vsel %vm402, %v1639, %v1843
        %v1861 = vsel %vm402, %v1640, %v1845
        %v1863 = vsel %vm402, %v1641, %v1847
        %v1873 = vunpack.c.l.b16 %v1849
        %v1874 = vunpack.c.l.b16 %v1636
        %v1875 = vunpack.c.l.b16 %v1851
        %v1876 = vunpack.c.l.b16 %v1637
        %v1877 = vunpack.c.l.b16 %v1853
        %v1878 = vunpack.c.l.b16 %v1638
        %v1879 = vunpack.c.l.b16 %v1855
        %v1880 = vunpack.c.l.b16 %v1639
        %v1881 = vunpack.c.l.b16 %v1857
        %v1882 = vunpack.c.l.b16 %v1640
        %v1883 = vunpack.c.l.b16 %v1859
        %v1884 = vunpack.c.l.b16 %v1641
        %v1885 = vunpack.c.l.b16 %v1861
        %v1886 = vunpack.c.l.b16 %v1642
        %v1887 = vunpack.c.l.b16 %v1863
        %v1888 = vunpack.c.l.b16 0
        %s1889 = scalar_lea.vmem %s5, 96
        %v1890 = vld [vmem:[%s1889] sm:$0xf]
        %v1891 = vld [vmem:[%s1889 + $0x4] sm:$0xf]
        %v1892 = vld [vmem:[%s1889 + $0x8] sm:$0xf]
        %v1893 = vld [vmem:[%s1889 + $0xc] sm:$0xf]
        %v1894 = vld [vmem:[%s1889 + $0x10] sm:$0xf]
        %v1895 = vld [vmem:[%s1889 + $0x14] sm:$0xf]
        %v1896 = vld [vmem:[%s1889 + $0x18] sm:$0xf]
        %v1897 = vld [vmem:[%s1889 + $0x1c] sm:$0xf]
        %v1898 = vld [vmem:[%s1889 + $0x20] sm:$0xf]
        %v1899 = vld [vmem:[%s1889 + $0x24] sm:$0xf]
        %v1900 = vld [vmem:[%s1889 + $0x28] sm:$0xf]
        %v1901 = vld [vmem:[%s1889 + $0x2c] sm:$0xf]
        %v1902 = vld [vmem:[%s1889 + $0x30] sm:$0xf]
        %v1903 = vld [vmem:[%s1889 + $0x34] sm:$0xf]
        %v1904 = vld [vmem:[%s1889 + $0x38] sm:$0xf]
        %v1905 = vld [vmem:[%s1889 + $0x3c] sm:$0xf]
        %v1906 = vld [vmem:[%s1889 + $0x40] sm:$0xf]
        %v1907 = vld [vmem:[%s1889 + $0x44] sm:$0xf]
        %v1908 = vld [vmem:[%s1889 + $0x48] sm:$0xf]
        %v1909 = vld [vmem:[%s1889 + $0x4c] sm:$0xf]
        %v1910 = vld [vmem:[%s1889 + $0x50] sm:$0xf]
        %v1911 = vld [vmem:[%s1889 + $0x54] sm:$0xf]
        %v1912 = vld [vmem:[%s1889 + $0x58] sm:$0xf]
        %v1913 = vld [vmem:[%s1889 + $0x5c] sm:$0xf]
        %v1914 = vpack.c.b16 %v1875, %v1873
        %v1915 = vpack.c.b16 %v1876, %v1874
        %v1916 = vpack.c.b16 %v1879, %v1877
        %v1917 = vpack.c.b16 %v1880, %v1878
        %v1918 = vpack.c.b16 %v1883, %v1881
        %v1919 = vpack.c.b16 %v1884, %v1882
        %v1920 = vpack.c.b16 %v1887, %v1885
        %v1921 = vpack.c.b16 %v1888, %v1886
        %v1950 = vunpack.c.l.b16 %v1890
        %v1951 = vunpack.c.l.b16 %v1891
        %v1952 = vunpack.c.l.b16 %v1892
        %v1953 = vunpack.c.l.b16 %v1893
        %v1954 = vunpack.c.l.b16 %v1894
        %v1955 = vunpack.c.l.b16 %v1895
        %v1956 = vunpack.c.l.b16 %v1896
        %v1957 = vunpack.c.l.b16 %v1897
        %v1958 = vunpack.c.l.b16 %v1898
        %v1959 = vunpack.c.l.b16 %v1899
        %v1960 = vunpack.c.l.b16 %v1900
        %v1961 = vunpack.c.l.b16 %v1901
        %v1962 = vunpack.c.l.b16 %v1902
        %v1963 = vunpack.c.l.b16 %v1903
        %v1964 = vunpack.c.l.b16 %v1904
        %v1965 = vunpack.c.l.b16 %v1905
        %v1966 = vunpack.c.l.b16 %v1906
        %v1967 = vunpack.c.l.b16 %v1907
        %v1968 = vunpack.c.l.b16 %v1908
        %v1969 = vunpack.c.l.b16 %v1909
        %v1970 = vunpack.c.l.b16 %v1910
        %v1971 = vunpack.c.l.b16 %v1911
        %v1972 = vunpack.c.l.b16 %v1912
        %v1973 = vunpack.c.l.b16 %v1913
        %v1974 = vpack.c.b16 %v1951, %v1950
        %v1975 = vpack.c.b16 %v1953, %v1952
        %v1976 = vpack.c.b16 %v1955, %v1954
        %v1977 = vpack.c.b16 %v1957, %v1956
        %v1978 = vpack.c.b16 %v1959, %v1958
        %v1979 = vpack.c.b16 %v1961, %v1960
        %v1980 = vpack.c.b16 %v1963, %v1962
        %v1981 = vpack.c.b16 %v1965, %v1964
        %v1982 = vpack.c.b16 %v1967, %v1966
        %v1983 = vpack.c.b16 %v1969, %v1968
        %v1984 = vpack.c.b16 %v1971, %v1970
        %v1985 = vpack.c.b16 %v1973, %v1972
        %v1999 = vsel %vm402, %v1915, 0
        %v2002 = vsel %vm402, %v1917, 0
        %v2005 = vsel %vm402, %v1919, 0
        %v2008 = vsel %vm402, %v1921, 0
        %2010 = vmatprep.subr.bf16.mxu0 0
        %2011 = vmatpush1.bf16.msra.mxu0 %v1981
        %2012 = vmatprep.subr.bf16.mxu0 0
        %2013 = vmatpush1.bf16.msra.mxu0 %v1980
        %2014 = vmatprep.subr.bf16.mxu0 0
        %2015 = vmatpush1.bf16.msra.mxu0 %v1979
        %2016 = vmatprep.subr.bf16.mxu0 0
        %2017 = vmatpush1.bf16.msra.mxu0 %v1978
        %2018 = vmatprep.subr.bf16.mxu0 0
        %2019 = vmatpush1.bf16.msra.mxu0 %v1977
        %2020 = vmatprep.subr.bf16.mxu0 0
        %2021 = vmatpush1.bf16.msra.mxu0 %v1976
        %2022 = vmatprep.subr.bf16.mxu0 0
        %2023 = vmatpush1.bf16.msra.mxu0 %v1975
        %2024 = vmatprep.subr.bf16.mxu0 0
        %2025 = vmatpush1.bf16.msra.mxu0 %v1974
        %2026 = vmatprep.subr.bf16.mxu0 0
        %2027 = vmatpush2.bf16.msra.mxu0 0
        %2028 = vmatprep.subr.bf16.mxu0 0
        %2029 = vmatpush2.bf16.msra.mxu0 0
        %2030 = vmatprep.subr.bf16.mxu0 0
        %2031 = vmatpush2.bf16.msra.mxu0 0
        %2032 = vmatprep.subr.bf16.mxu0 0
        %2033 = vmatpush2.bf16.msra.mxu0 0
        %2034 = vmatprep.subr.bf16.mxu0 0
        %2035 = vmatpush2.bf16.msra.mxu0 %v1985
        %2036 = vmatprep.subr.bf16.mxu0 0
        %2037 = vmatpush2.bf16.msra.mxu0 %v1984
        %2038 = vmatprep.subr.bf16.mxu0 0
        %2039 = vmatpush2.bf16.msra.mxu0 %v1983
        %2040 = vmatprep.subr.bf16.mxu0 0
        %2041 = vmatpush2.bf16.msra.mxu0 %v1982
        %2042 = vmatprep.mubr.bf16.mxu0 %v1999
        %2043 = vmatmul.mubr.bf16.gmra.mxu0 %v1914
        %v2044 = vpop.f32.mrf.mxu0
        %v2045 = vadd.f32 0.0, %v2044
        %v2046 = vpop.f32.mrf.mxu0
        %v2047 = vpop.f32.mrf.mxu0
        %v2048 = vadd.f32 0.0, %v2047
        %v2049 = vpop.f32.mrf.mxu0
        %2050 = vmatprep.mubr.bf16.mxu0 %v2002
        %2051 = vmatmul.mubr.bf16.gmra.mxu0 %v1916
        %v2052 = vpop.f32.mrf.mxu0
        %v2053 = vadd.f32 0.0, %v2052
        %v2054 = vpop.f32.mrf.mxu0
        %v2055 = vpop.f32.mrf.mxu0
        %v2056 = vadd.f32 0.0, %v2055
        %v2057 = vpop.f32.mrf.mxu0
        %2058 = vmatprep.mubr.bf16.mxu0 %v2005
        %2059 = vmatmul.mubr.bf16.gmra.mxu0 %v1918
        %v2060 = vpop.f32.mrf.mxu0
        %v2061 = vadd.f32 0.0, %v2060
        %v2062 = vpop.f32.mrf.mxu0
        %v2063 = vpop.f32.mrf.mxu0
        %v2064 = vadd.f32 0.0, %v2063
        %v2065 = vpop.f32.mrf.mxu0
        %2066 = vmatprep.mubr.bf16.mxu0 %v2008
        %2067 = vmatmul.mubr.bf16.gmra.mxu0 %v1920
        %v2068 = vpop.f32.mrf.mxu0
        %v2069 = vadd.f32 0.0, %v2068
        %v2070 = vpop.f32.mrf.mxu0
        %v2071 = vpop.f32.mrf.mxu0
        %v2072 = vadd.f32 0.0, %v2071
        %v2073 = vpop.f32.mrf.mxu0
        %2074 = vdwg.mxu0
        %v2075 = vpack.c.b16 %v1786, %v1784
        %v2076 = vpack.c.b16 %v1787, %v1785
        %v2077 = vpack.c.b16 %v1790, %v1788
        %v2078 = vpack.c.b16 %v1791, %v1789
        %v2079 = vpack.c.b16 %v1794, %v1792
        %v2080 = vpack.c.b16 %v1795, %v1793
        %v2081 = vpack.c.b16 %v1798, %v1796
        %v2082 = vpack.c.b16 %v1799, %v1797
        %v2111 = vunpack.c.l.b16 %v1800
        %v2112 = vunpack.c.l.b16 %v1801
        %v2113 = vunpack.c.l.b16 %v1802
        %v2114 = vunpack.c.l.b16 %v1803
        %v2115 = vunpack.c.l.b16 %v1804
        %v2116 = vunpack.c.l.b16 %v1805
        %v2117 = vunpack.c.l.b16 %v1806
        %v2118 = vunpack.c.l.b16 %v1807
        %v2119 = vunpack.c.l.b16 %v1808
        %v2120 = vunpack.c.l.b16 %v1809
        %v2121 = vunpack.c.l.b16 %v1810
        %v2122 = vunpack.c.l.b16 %v1811
        %v2123 = vunpack.c.l.b16 %v1812
        %v2124 = vunpack.c.l.b16 %v1813
        %v2125 = vunpack.c.l.b16 %v1814
        %v2126 = vunpack.c.l.b16 %v1815
        %v2127 = vunpack.c.l.b16 %v1816
        %v2128 = vunpack.c.l.b16 %v1817
        %v2129 = vunpack.c.l.b16 %v1818
        %v2130 = vunpack.c.l.b16 %v1819
        %v2131 = vunpack.c.l.b16 %v1820
        %v2132 = vunpack.c.l.b16 %v1821
        %v2133 = vunpack.c.l.b16 %v1822
        %v2134 = vunpack.c.l.b16 %v1823
        %v2135 = vpack.c.b16 %v2112, %v2111
        %v2136 = vpack.c.b16 %v2114, %v2113
        %v2137 = vpack.c.b16 %v2116, %v2115
        %v2138 = vpack.c.b16 %v2118, %v2117
        %v2139 = vpack.c.b16 %v2120, %v2119
        %v2140 = vpack.c.b16 %v2122, %v2121
        %v2141 = vpack.c.b16 %v2124, %v2123
        %v2142 = vpack.c.b16 %v2126, %v2125
        %v2143 = vpack.c.b16 %v2128, %v2127
        %v2144 = vpack.c.b16 %v2130, %v2129
        %v2145 = vpack.c.b16 %v2132, %v2131
        %v2146 = vpack.c.b16 %v2134, %v2133
        %v2160 = vsel %vm402, %v2076, 0
        %v2163 = vsel %vm402, %v2078, 0
        %v2166 = vsel %vm402, %v2080, 0
        %v2169 = vsel %vm402, %v2082, 0
        %2171 = vmatprep.subr.bf16.mxu0 0
        %2172 = vmatpush1.bf16.msra.mxu0 %v2142
        %2173 = vmatprep.subr.bf16.mxu0 0
        %2174 = vmatpush1.bf16.msra.mxu0 %v2141
        %2175 = vmatprep.subr.bf16.mxu0 0
        %2176 = vmatpush1.bf16.msra.mxu0 %v2140
        %2177 = vmatprep.subr.bf16.mxu0 0
        %2178 = vmatpush1.bf16.msra.mxu0 %v2139
        %2179 = vmatprep.subr.bf16.mxu0 0
        %2180 = vmatpush1.bf16.msra.mxu0 %v2138
        %2181 = vmatprep.subr.bf16.mxu0 0
        %2182 = vmatpush1.bf16.msra.mxu0 %v2137
        %2183 = vmatprep.subr.bf16.mxu0 0
        %2184 = vmatpush1.bf16.msra.mxu0 %v2136
        %2185 = vmatprep.subr.bf16.mxu0 0
        %2186 = vmatpush1.bf16.msra.mxu0 %v2135
        %2187 = vmatprep.subr.bf16.mxu0 0
        %2188 = vmatpush2.bf16.msra.mxu0 0
        %2189 = vmatprep.subr.bf16.mxu0 0
        %2190 = vmatpush2.bf16.msra.mxu0 0
        %2191 = vmatprep.subr.bf16.mxu0 0
        %2192 = vmatpush2.bf16.msra.mxu0 0
        %2193 = vmatprep.subr.bf16.mxu0 0
        %2194 = vmatpush2.bf16.msra.mxu0 0
        %2195 = vmatprep.subr.bf16.mxu0 0
        %2196 = vmatpush2.bf16.msra.mxu0 %v2146
        %2197 = vmatprep.subr.bf16.mxu0 0
        %2198 = vmatpush2.bf16.msra.mxu0 %v2145
        %2199 = vmatprep.subr.bf16.mxu0 0
        %2200 = vmatpush2.bf16.msra.mxu0 %v2144
        %2201 = vmatprep.subr.bf16.mxu0 0
        %2202 = vmatpush2.bf16.msra.mxu0 %v2143
        %2203 = vmatprep.mubr.bf16.mxu0 %v2160
        %2204 = vmatmul.mubr.bf16.gmra.mxu0 %v2075
        %v2205 = vpop.f32.mrf.mxu0
        %v2206 = vadd.f32 %v2045, %v2205
        %v2207 = vpop.f32.mrf.mxu0
        %v2208 = vpop.f32.mrf.mxu0
        %v2209 = vadd.f32 %v2048, %v2208
        %v2210 = vpop.f32.mrf.mxu0
        %2211 = vmatprep.mubr.bf16.mxu0 %v2163
        %2212 = vmatmul.mubr.bf16.gmra.mxu0 %v2077
        %v2213 = vpop.f32.mrf.mxu0
        %v2214 = vadd.f32 %v2053, %v2213
        %v2215 = vpop.f32.mrf.mxu0
        %v2216 = vpop.f32.mrf.mxu0
        %v2217 = vadd.f32 %v2056, %v2216
        %v2218 = vpop.f32.mrf.mxu0
        %2219 = vmatprep.mubr.bf16.mxu0 %v2166
        %2220 = vmatmul.mubr.bf16.gmra.mxu0 %v2079
        %v2221 = vpop.f32.mrf.mxu0
        %v2222 = vadd.f32 %v2061, %v2221
        %v2223 = vpop.f32.mrf.mxu0
        %v2224 = vpop.f32.mrf.mxu0
        %v2225 = vadd.f32 %v2064, %v2224
        %v2226 = vpop.f32.mrf.mxu0
        %2227 = vmatprep.mubr.bf16.mxu0 %v2169
        %2228 = vmatmul.mubr.bf16.gmra.mxu0 %v2081
        %v2229 = vpop.f32.mrf.mxu0
        %v2230 = vadd.f32 %v2069, %v2229
        %v2231 = vpop.f32.mrf.mxu0
        %v2232 = vpop.f32.mrf.mxu0
        %v2233 = vadd.f32 %v2072, %v2232
        %v2234 = vpop.f32.mrf.mxu0
        %2235 = vdwg.mxu0
        %v2236 = vrot.slane %v1647, 1
        %v2237 = vor.u32 %v1644, %v2236
        %v2238 = vrot.slane %v1654, 1
        %v2239 = vor.u32 %v1651, %v2238
        %v2240 = vrot.slane %v1661, 1
        %v2241 = vor.u32 %v1658, %v2240
        %v2242 = vrot.slane %v1668, 1
        %v2243 = vor.u32 %v1665, %v2242
        %v2244 = vrot.slane %v1675, 1
        %v2245 = vor.u32 %v1672, %v2244
        %v2246 = vrot.slane %v1682, 1
        %v2247 = vor.u32 %v1679, %v2246
        %v2248 = vrot.slane %v1689, 1
        %v2249 = vor.u32 %v1686, %v2248
        %v2250 = vrot.slane %v1696, 1
        %v2251 = vor.u32 %v1693, %v2250
        %v2252 = vrot.slane %v1703, 1
        %v2253 = vor.u32 %v1700, %v2252
        %vm2263 = vcmask 1043456
        %vm2264 = vmand %vm2263, %vm590
        %v2265 = vsel %vm2264, %v2237, 0
        %v2266 = vsel %vm2264, %v2239, 0
        %v2267 = vsel %vm2264, %v2241, 0
        %v2268 = vsel %vm2264, %v2243, 0
        %v2269 = vsel %vm2264, %v2245, 0
        %v2270 = vsel %vm2264, %v2247, 0
        %v2271 = vsel %vm2264, %v2249, 0
        %v2272 = vsel %vm2264, %v2251, 0
        %v2273 = vsel %vm2264, %v2253, 0
        %2282 = vrot.lane.b32.xlu0 %v2266, 64
        %v2283 = vpop.permute.xlu0 %2282
        %2284 = vrot.lane.b32.xlu0 %v2267, 64
        %v2285 = vpop.permute.xlu0 %2284
        %2286 = vrot.lane.b32.xlu0 %v2268, 64
        %v2287 = vpop.permute.xlu0 %2286
        %2288 = vrot.lane.b32.xlu0 %v2269, 64
        %v2289 = vpop.permute.xlu0 %2288
        %2290 = vrot.lane.b32.xlu0 %v2270, 64
        %v2291 = vpop.permute.xlu0 %2290
        %2292 = vrot.lane.b32.xlu0 %v2271, 64
        %v2293 = vpop.permute.xlu0 %2292
        %2294 = vrot.lane.b32.xlu0 %v2272, 64
        %v2295 = vpop.permute.xlu0 %2294
        %2296 = vrot.lane.b32.xlu0 %v2273, 64
        %v2297 = vpop.permute.xlu0 %2296
        %v2300 = vsel %vm402, %v2265, %v2283
        %v2303 = vsel %vm402, %v2266, %v2285
        %v2306 = vsel %vm402, %v2267, %v2287
        %v2309 = vsel %vm402, %v2268, %v2289
        %v2312 = vsel %vm402, %v2269, %v2291
        %v2315 = vsel %vm402, %v2270, %v2293
        %v2318 = vsel %vm402, %v2271, %v2295
        %v2321 = vsel %vm402, %v2272, %v2297
        %v2331 = vunpack.c.l.b16 %v2300
        %v2332 = vunpack.c.l.b16 %v2267
        %v2333 = vunpack.c.l.b16 %v2303
        %v2334 = vunpack.c.l.b16 %v2268
        %v2335 = vunpack.c.l.b16 %v2306
        %v2336 = vunpack.c.l.b16 %v2269
        %v2337 = vunpack.c.l.b16 %v2309
        %v2338 = vunpack.c.l.b16 %v2270
        %v2339 = vunpack.c.l.b16 %v2312
        %v2340 = vunpack.c.l.b16 %v2271
        %v2341 = vunpack.c.l.b16 %v2315
        %v2342 = vunpack.c.l.b16 %v2272
        %v2343 = vunpack.c.l.b16 %v2318
        %v2344 = vunpack.c.l.b16 %v2273
        %v2345 = vunpack.c.l.b16 %v2321
        %v2346 = vunpack.c.l.b16 %v2265
        %s2347 = scalar_lea.vmem %s5, 192
        %v2348 = vld [vmem:[%s2347] sm:$0xf]
        %v2349 = vld [vmem:[%s2347 + $0x4] sm:$0xf]
        %v2350 = vld [vmem:[%s2347 + $0x8] sm:$0xf]
        %v2351 = vld [vmem:[%s2347 + $0xc] sm:$0xf]
        %v2352 = vld [vmem:[%s2347 + $0x10] sm:$0xf]
        %v2353 = vld [vmem:[%s2347 + $0x14] sm:$0xf]
        %v2354 = vld [vmem:[%s2347 + $0x18] sm:$0xf]
        %v2355 = vld [vmem:[%s2347 + $0x1c] sm:$0xf]
        %v2356 = vld [vmem:[%s2347 + $0x20] sm:$0xf]
        %v2357 = vld [vmem:[%s2347 + $0x24] sm:$0xf]
        %v2358 = vld [vmem:[%s2347 + $0x28] sm:$0xf]
        %v2359 = vld [vmem:[%s2347 + $0x2c] sm:$0xf]
        %v2360 = vld [vmem:[%s2347 + $0x30] sm:$0xf]
        %v2361 = vld [vmem:[%s2347 + $0x34] sm:$0xf]
        %v2362 = vld [vmem:[%s2347 + $0x38] sm:$0xf]
        %v2363 = vld [vmem:[%s2347 + $0x3c] sm:$0xf]
        %v2364 = vld [vmem:[%s2347 + $0x40] sm:$0xf]
        %v2365 = vld [vmem:[%s2347 + $0x44] sm:$0xf]
        %v2366 = vld [vmem:[%s2347 + $0x48] sm:$0xf]
        %v2367 = vld [vmem:[%s2347 + $0x4c] sm:$0xf]
        %v2368 = vld [vmem:[%s2347 + $0x50] sm:$0xf]
        %v2369 = vld [vmem:[%s2347 + $0x54] sm:$0xf]
        %v2370 = vld [vmem:[%s2347 + $0x58] sm:$0xf]
        %v2371 = vld [vmem:[%s2347 + $0x5c] sm:$0xf]
        %v2372 = vpack.c.b16 %v2333, %v2331
        %v2373 = vpack.c.b16 %v2334, %v2332
        %v2374 = vpack.c.b16 %v2337, %v2335
        %v2375 = vpack.c.b16 %v2338, %v2336
        %v2376 = vpack.c.b16 %v2341, %v2339
        %v2377 = vpack.c.b16 %v2342, %v2340
        %v2378 = vpack.c.b16 %v2345, %v2343
        %v2379 = vpack.c.b16 %v2346, %v2344
        %v2408 = vunpack.c.l.b16 %v2348
        %v2409 = vunpack.c.l.b16 %v2349
        %v2410 = vunpack.c.l.b16 %v2350
        %v2411 = vunpack.c.l.b16 %v2351
        %v2412 = vunpack.c.l.b16 %v2352
        %v2413 = vunpack.c.l.b16 %v2353
        %v2414 = vunpack.c.l.b16 %v2354
        %v2415 = vunpack.c.l.b16 %v2355
        %v2416 = vunpack.c.l.b16 %v2356
        %v2417 = vunpack.c.l.b16 %v2357
        %v2418 = vunpack.c.l.b16 %v2358
        %v2419 = vunpack.c.l.b16 %v2359
        %v2420 = vunpack.c.l.b16 %v2360
        %v2421 = vunpack.c.l.b16 %v2361
        %v2422 = vunpack.c.l.b16 %v2362
        %v2423 = vunpack.c.l.b16 %v2363
        %v2424 = vunpack.c.l.b16 %v2364
        %v2425 = vunpack.c.l.b16 %v2365
        %v2426 = vunpack.c.l.b16 %v2366
        %v2427 = vunpack.c.l.b16 %v2367
        %v2428 = vunpack.c.l.b16 %v2368
        %v2429 = vunpack.c.l.b16 %v2369
        %v2430 = vunpack.c.l.b16 %v2370
        %v2431 = vunpack.c.l.b16 %v2371
        %v2432 = vpack.c.b16 %v2409, %v2408
        %v2433 = vpack.c.b16 %v2411, %v2410
        %v2434 = vpack.c.b16 %v2413, %v2412
        %v2435 = vpack.c.b16 %v2415, %v2414
        %v2436 = vpack.c.b16 %v2417, %v2416
        %v2437 = vpack.c.b16 %v2419, %v2418
        %v2438 = vpack.c.b16 %v2421, %v2420
        %v2439 = vpack.c.b16 %v2423, %v2422
        %v2440 = vpack.c.b16 %v2425, %v2424
        %v2441 = vpack.c.b16 %v2427, %v2426
        %v2442 = vpack.c.b16 %v2429, %v2428
        %v2443 = vpack.c.b16 %v2431, %v2430
        %v2457 = vsel %vm402, %v2373, 0
        %v2460 = vsel %vm402, %v2375, 0
        %v2463 = vsel %vm402, %v2377, 0
        %v2466 = vsel %vm402, %v2379, 0
        %2468 = vmatprep.subr.bf16.mxu0 0
        %2469 = vmatpush1.bf16.msra.mxu0 %v2439
        %2470 = vmatprep.subr.bf16.mxu0 0
        %2471 = vmatpush1.bf16.msra.mxu0 %v2438
        %2472 = vmatprep.subr.bf16.mxu0 0
        %2473 = vmatpush1.bf16.msra.mxu0 %v2437
        %2474 = vmatprep.subr.bf16.mxu0 0
        %2475 = vmatpush1.bf16.msra.mxu0 %v2436
        %2476 = vmatprep.subr.bf16.mxu0 0
        %2477 = vmatpush1.bf16.msra.mxu0 %v2435
        %2478 = vmatprep.subr.bf16.mxu0 0
        %2479 = vmatpush1.bf16.msra.mxu0 %v2434
        %2480 = vmatprep.subr.bf16.mxu0 0
        %2481 = vmatpush1.bf16.msra.mxu0 %v2433
        %2482 = vmatprep.subr.bf16.mxu0 0
        %2483 = vmatpush1.bf16.msra.mxu0 %v2432
        %2484 = vmatprep.subr.bf16.mxu0 0
        %2485 = vmatpush2.bf16.msra.mxu0 0
        %2486 = vmatprep.subr.bf16.mxu0 0
        %2487 = vmatpush2.bf16.msra.mxu0 0
        %2488 = vmatprep.subr.bf16.mxu0 0
        %2489 = vmatpush2.bf16.msra.mxu0 0
        %2490 = vmatprep.subr.bf16.mxu0 0
        %2491 = vmatpush2.bf16.msra.mxu0 0
        %2492 = vmatprep.subr.bf16.mxu0 0
        %2493 = vmatpush2.bf16.msra.mxu0 %v2443
        %2494 = vmatprep.subr.bf16.mxu0 0
        %2495 = vmatpush2.bf16.msra.mxu0 %v2442
        %2496 = vmatprep.subr.bf16.mxu0 0
        %2497 = vmatpush2.bf16.msra.mxu0 %v2441
        %2498 = vmatprep.subr.bf16.mxu0 0
        %2499 = vmatpush2.bf16.msra.mxu0 %v2440
        %2500 = vmatprep.mubr.bf16.mxu0 %v2457
        %2501 = vmatmul.mubr.bf16.gmra.mxu0 %v2372
        %v2502 = vpop.f32.mrf.mxu0
        %v2503 = vadd.f32 0.0, %v2502
        %v2504 = vpop.f32.mrf.mxu0
        %v2505 = vpop.f32.mrf.mxu0
        %v2506 = vadd.f32 0.0, %v2505
        %v2507 = vpop.f32.mrf.mxu0
        %2508 = vmatprep.mubr.bf16.mxu0 %v2460
        %2509 = vmatmul.mubr.bf16.gmra.mxu0 %v2374
        %v2510 = vpop.f32.mrf.mxu0
        %v2511 = vadd.f32 0.0, %v2510
        %v2512 = vpop.f32.mrf.mxu0
        %v2513 = vpop.f32.mrf.mxu0
        %v2514 = vadd.f32 0.0, %v2513
        %v2515 = vpop.f32.mrf.mxu0
        %2516 = vmatprep.mubr.bf16.mxu0 %v2463
        %2517 = vmatmul.mubr.bf16.gmra.mxu0 %v2376
        %v2518 = vpop.f32.mrf.mxu0
        %v2519 = vadd.f32 0.0, %v2518
        %v2520 = vpop.f32.mrf.mxu0
        %v2521 = vpop.f32.mrf.mxu0
        %v2522 = vadd.f32 0.0, %v2521
        %v2523 = vpop.f32.mrf.mxu0
        %2524 = vmatprep.mubr.bf16.mxu0 %v2466
        %2525 = vmatmul.mubr.bf16.gmra.mxu0 %v2378
        %v2526 = vpop.f32.mrf.mxu0
        %v2527 = vadd.f32 0.0, %v2526
        %v2528 = vpop.f32.mrf.mxu0
        %v2529 = vpop.f32.mrf.mxu0
        %v2530 = vadd.f32 0.0, %v2529
        %v2531 = vpop.f32.mrf.mxu0
        %2532 = vdwg.mxu0
        %v2533 = vadd.f32 %v2206, %v2503
        %v2534 = vadd.f32 %v2209, %v2506
        %v2535 = vadd.f32 %v2214, %v2511
        %v2536 = vadd.f32 %v2217, %v2514
        %v2537 = vadd.f32 %v2222, %v2519
        %v2538 = vadd.f32 %v2225, %v2522
        %v2539 = vadd.f32 %v2230, %v2527
        %v2540 = vadd.f32 %v2233, %v2530
        %v2541 = vsel %vm402, %v2533, 0.0
        %v2542 = vsel %vm402, %v2534, 0.0
        %v2543 = vadd.f32 %v2541, %v2542
        %v2544 = vsel %vm402, %v2535, 0.0
        %v2545 = vadd.f32 %v2543, %v2544
        %v2546 = vsel %vm402, %v2536, 0.0
        %v2547 = vadd.f32 %v2545, %v2546
        %v2548 = vsel %vm402, %v2537, 0.0
        %v2549 = vadd.f32 %v2547, %v2548
        %v2550 = vsel %vm402, %v2538, 0.0
        %v2551 = vadd.f32 %v2549, %v2550
        %v2552 = vsel %vm402, %v2539, 0.0
        %v2553 = vadd.f32 %v2551, %v2552
        %v2554 = vsel %vm402, %v2540, 0.0
        %v2555 = vadd.f32 %v2553, %v2554
        %v2556 = vrot.slane %v2555, 4
        %v2557 = vadd.f32 %v2555, %v2556
        %v2558 = vrot.slane %v2557, 2
        %v2559 = vadd.f32 %v2557, %v2558
        %v2560 = vrot.slane %v2559, 1
        %v2561 = vadd.f32 %v2559, %v2560
        %v2562 = vmul.f32 %v2533, %v2533
        %v2563 = vmul.f32 %v2534, %v2534
        %v2564 = vmul.f32 %v2535, %v2535
        %v2565 = vmul.f32 %v2536, %v2536
        %v2566 = vmul.f32 %v2537, %v2537
        %v2567 = vmul.f32 %v2538, %v2538
        %v2568 = vmul.f32 %v2539, %v2539
        %v2569 = vmul.f32 %v2540, %v2540
        %v2570 = vsel %vm402, %v2562, 0.0
        %v2571 = vsel %vm402, %v2563, 0.0
        %v2572 = vadd.f32 %v2570, %v2571
        %v2573 = vsel %vm402, %v2564, 0.0
        %v2574 = vadd.f32 %v2572, %v2573
        %v2575 = vsel %vm402, %v2565, 0.0
        %v2576 = vadd.f32 %v2574, %v2575
        %v2577 = vsel %vm402, %v2566, 0.0
        %v2578 = vadd.f32 %v2576, %v2577
        %v2579 = vsel %vm402, %v2567, 0.0
        %v2580 = vadd.f32 %v2578, %v2579
        %v2581 = vsel %vm402, %v2568, 0.0
        %v2582 = vadd.f32 %v2580, %v2581
        %v2583 = vsel %vm402, %v2569, 0.0
        %v2584 = vadd.f32 %v2582, %v2583
        %v2585 = vrot.slane %v2584, 4
        %v2586 = vadd.f32 %v2584, %v2585
        %v2587 = vrot.slane %v2586, 2
        %v2588 = vadd.f32 %v2586, %v2587
        %v2589 = vrot.slane %v2588, 1
        %v2590 = vadd.f32 %v2588, %v2589
        %v2591 = vsel %vm1482, %v2561, %v2590
        %v2593 = vsel %vm402, %v2591, 0
        %2595 = vmatprep.subr.mxu0 0.0
        %2596 = vmatpush1.msra.mxu0 0.0
        %2597 = vmatprep.subr.mxu0 0.0
        %2598 = vmatpush1.msra.mxu0 0.0
        %2599 = vmatprep.subr.mxu0 0.0
        %2600 = vmatpush1.msra.mxu0 0.0
        %2601 = vmatprep.subr.mxu0 0.0
        %2602 = vmatpush1.msra.mxu0 0.0
        %2603 = vmatprep.subr.mxu0 0.0
        %2604 = vmatpush1.msra.mxu0 0.0
        %2605 = vmatprep.subr.mxu0 0.0
        %2606 = vmatpush1.msra.mxu0 0.0
        %2607 = vmatprep.subr.mxu0 0.0
        %2608 = vmatpush1.msra.mxu0 0.0
        %2609 = vmatprep.subr.mxu0 0.0
        %2610 = vmatpush1.msra.mxu0 0.0
        %2611 = vmatprep.subr.mxu0 0.0
        %2612 = vmatpush1.msra.mxu0 %v1491
        %2613 = vmatprep.subr.mxu0 0.0
        %2614 = vmatpush1.msra.mxu0 %v1490
        %2615 = vmatprep.subr.mxu0 0.0
        %2616 = vmatpush1.msra.mxu0 %v1489
        %2617 = vmatprep.subr.mxu0 0.0
        %2618 = vmatpush1.msra.mxu0 %v1488
        %2619 = vmatprep.subr.mxu0 0.0
        %2620 = vmatpush1.msra.mxu0 %v1487
        %2621 = vmatprep.subr.mxu0 0.0
        %2622 = vmatpush1.msra.mxu0 %v1486
        %2623 = vmatprep.subr.mxu0 0.0
        %2624 = vmatpush1.msra.mxu0 %v1485
        %2625 = vmatprep.subr.mxu0 0.0
        %2626 = vmatpush1.msra.mxu0 %v1484
        %2627 = vmatprep.subr.mxu0 0.0
        %2628 = vmatpush2.msra.mxu0 0.0
        %2629 = vmatprep.subr.mxu0 0.0
        %2630 = vmatpush2.msra.mxu0 0.0
        %2631 = vmatprep.subr.mxu0 0.0
        %2632 = vmatpush2.msra.mxu0 0.0
        %2633 = vmatprep.subr.mxu0 0.0
        %2634 = vmatpush2.msra.mxu0 0.0
        %2635 = vmatprep.subr.mxu0 0.0
        %2636 = vmatpush2.msra.mxu0 0.0
        %2637 = vmatprep.subr.mxu0 0.0
        %2638 = vmatpush2.msra.mxu0 0.0
        %2639 = vmatprep.subr.mxu0 0.0
        %2640 = vmatpush2.msra.mxu0 0.0
        %2641 = vmatprep.subr.mxu0 0.0
        %2642 = vmatpush2.msra.mxu0 0.0
        %2643 = vmatprep.subr.mxu0 0.0
        %2644 = vmatpush2.msra.mxu0 0.0
        %2645 = vmatprep.subr.mxu0 0.0
        %2646 = vmatpush2.msra.mxu0 0.0
        %2647 = vmatprep.subr.mxu0 0.0
        %2648 = vmatpush2.msra.mxu0 0.0
        %2649 = vmatprep.subr.mxu0 0.0
        %2650 = vmatpush2.msra.mxu0 0.0
        %2651 = vmatprep.subr.mxu0 0.0
        %2652 = vmatpush2.msra.mxu0 0.0
        %2653 = vmatprep.subr.mxu0 0.0
        %2654 = vmatpush2.msra.mxu0 0.0
        %2655 = vmatprep.subr.mxu0 0.0
        %2656 = vmatpush2.msra.mxu0 0.0
        %2657 = vmatprep.subr.mxu0 0.0
        %2658 = vmatpush2.msra.mxu0 0.0
        %2659 = vmatprep.mubr.f32.mxu0 0.0
        %2660 = vmatmul.mubr.f32.gmra.mxu0 %v2593
        %v2661 = vpop.f32.mrf.mxu0
        %v2662 = vadd.f32 0.0, %v2661
        %v2663 = vpop.f32.mrf.mxu0
        %2664 = vdwg.mxu0
        %v2665 = vmul.f32 %v2662, %v2662
        %v2667 = vrot.slane %v2665, 7
        %v2669 = vsub.f32 %v2662, %v2667
        %v2670 = vmax.f32 %v2669, 0.0
        %v2671 = vadd.f32 %v2670, 1e-05
        %v2672 = vrsqrt.pop %v2671
        %v2673 = vlaneseq
        %v2674 = vshrl.u32 %v2673, 7
        %v2675 = vsub.s32 0, %v2674
        %v2676 = vrot.slane %v2662, %v2675
        %v2677 = vsub.f32 %v2533, %v2676
        %v2678 = vsub.f32 %v2534, %v2676
        %v2679 = vsub.f32 %v2535, %v2676
        %v2680 = vsub.f32 %v2536, %v2676
        %v2681 = vsub.f32 %v2537, %v2676
        %v2682 = vsub.f32 %v2538, %v2676
        %v2683 = vsub.f32 %v2539, %v2676
        %v2684 = vsub.f32 %v2540, %v2676
        %v2685 = vlaneseq
        %v2686 = vshrl.u32 %v2685, 7
        %v2687 = vsub.s32 1, %v2686
        %v2688 = vrot.slane %v2672, %v2687
        %v2689 = vmul.f32 %v2677, %v2688
        %v2690 = vmul.f32 %v2678, %v2688
        %v2691 = vmul.f32 %v2679, %v2688
        %v2692 = vmul.f32 %v2680, %v2688
        %v2693 = vmul.f32 %v2681, %v2688
        %v2694 = vmul.f32 %v2682, %v2688
        %v2695 = vmul.f32 %v2683, %v2688
        %v2696 = vmul.f32 %v2684, %v2688
        %v2697 = vld [vmem:[%s6] sm:$0x1]
        %v2699 = vlaneseq
        %v2700 = vshrl.u32 %v2699, 7
        %v2701 = vsub.s32 0, %v2700
        %v2702 = vrot.slane %v2697, %v2701
        %v2704 = vmul.f32 %v2689, %v2702
        %v2705 = vmul.f32 %v2690, %v2702
        %v2706 = vmul.f32 %v2691, %v2702
        %v2707 = vmul.f32 %v2692, %v2702
        %v2708 = vmul.f32 %v2693, %v2702
        %v2709 = vmul.f32 %v2694, %v2702
        %v2710 = vmul.f32 %v2695, %v2702
        %v2711 = vmul.f32 %v2696, %v2702
        %v2712 = vld [vmem:[%s7] sm:$0x1]
        %v2714 = vlaneseq
        %v2715 = vshrl.u32 %v2714, 7
        %v2716 = vsub.s32 0, %v2715
        %v2717 = vrot.slane %v2712, %v2716
        %v2719 = vadd.f32 %v2704, %v2717
        %v2720 = vadd.f32 %v2705, %v2717
        %v2721 = vadd.f32 %v2706, %v2717
        %v2722 = vadd.f32 %v2707, %v2717
        %v2723 = vadd.f32 %v2708, %v2717
        %v2724 = vadd.f32 %v2709, %v2717
        %v2725 = vadd.f32 %v2710, %v2717
        %v2726 = vadd.f32 %v2711, %v2717
        %v2727 = vld [vmem:[%s350] sm:$0xff]
        %v2728 = vld [vmem:[%s350 + $0x8] sm:$0xff]
        %v2729 = vld [vmem:[%s350 + $0x10] sm:$0xff]
        %v2730 = vld [vmem:[%s350 + $0x18] sm:$0xff]
        %v2731 = vld [vmem:[%s350 + $0x20] sm:$0xff]
        %v2732 = vld [vmem:[%s350 + $0x28] sm:$0xff]
        %v2733 = vld [vmem:[%s350 + $0x30] sm:$0xff]
        %v2734 = vld [vmem:[%s350 + $0x38] sm:$0xff]
        %v2735 = vadd.f32 %v2719, %v2727
        %v2736 = vadd.f32 %v2720, %v2728
        %v2737 = vadd.f32 %v2721, %v2729
        %v2738 = vadd.f32 %v2722, %v2730
        %v2739 = vadd.f32 %v2723, %v2731
        %v2740 = vadd.f32 %v2724, %v2732
        %v2741 = vadd.f32 %v2725, %v2733
        %v2742 = vadd.f32 %v2726, %v2734
        %v2743 = vmax.f32 %v2735, 0.0
        %v2744 = vmax.f32 %v2736, 0.0
        %v2745 = vmax.f32 %v2737, 0.0
        %v2746 = vmax.f32 %v2738, 0.0
        %v2747 = vmax.f32 %v2739, 0.0
        %v2748 = vmax.f32 %v2740, 0.0
        %v2749 = vmax.f32 %v2741, 0.0
        %v2750 = vmax.f32 %v2742, 0.0
        %2751 = vst.msk [vmem:[%s340] sm:$0xff] %vm402, %v2743
        %2752 = vst.msk [vmem:[%s340 + $0x8] sm:$0xff] %vm402, %v2744
        %2753 = vst.msk [vmem:[%s340 + $0x10] sm:$0xff] %vm402, %v2745
        %2754 = vst.msk [vmem:[%s340 + $0x18] sm:$0xff] %vm402, %v2746
        %2755 = vst.msk [vmem:[%s340 + $0x20] sm:$0xff] %vm402, %v2747
        %2756 = vst.msk [vmem:[%s340 + $0x28] sm:$0xff] %vm402, %v2748
        %2757 = vst.msk [vmem:[%s340 + $0x30] sm:$0xff] %vm402, %v2749
        %2758 = vst.msk [vmem:[%s340 + $0x38] sm:$0xff] %vm402, %v2750
        %s2759 = sand.u32 %s230, 1
        %s2760 = scalar_lea.sflag [#allocation3], %s2759
        %s2761 = sand.u32 %s230, 1
        %s2762 = smul.addr %s2761, 64
        %s2763 = scalar_lea.vmem [#allocation2], %s2762
        // Predicated region
        $region57: #{tpu_custom_call.1} parent=55 // pred_check
          %p2764 = pneg %p240
        $region58: #{tpu_custom_call.1} parent=55 // pred_check_branch
          %2766 = sbr.rel (%p2764) target = $region60
        $region59: #{tpu_custom_call.1} parent=55 // pred_region
          %s2768 = ssub.s32 1024, 1024
          %2769 = vsyncadd %s2760, %s2768
          %s2770 = smul.addr %s23, 8
          %s2771 = smul.addr %s2770, 128
          %s2772 = scalar_lea.hbm %s9, %s2771
          %s2773 = sshll.u32 %s2763, 4
          %s2774 = int_to_ptr.vmem [resolvable:$true] %s2773
          %2779 = dma.vmem_to_hbm [thread:$0]  %s2774, 1024, %s2772, %s2760, 128, 128, 8
        $region60: #{tpu_custom_call.1} parent=55 // pred_fallthru
          _
      $region56: #{tpu_custom_call.1} parent=5 // pred_fallthru
        _
      %p2780 = scmp.le.s32.totalorder 2, %s18
      // Predicated region
      $region61: #{tpu_custom_call.1} parent=5 // pred_check
        %p2781 = pneg %p2780
      $region62: #{tpu_custom_call.1} parent=5 // pred_check_branch
        %2783 = sbr.rel (%p2781) target = $region64
      $region63: #{tpu_custom_call.1} parent=5 // pred_region
        %s2784 = ssub.s32 %s18, 2
        // Predicated region
        $region65: #{tpu_custom_call.1} parent=63 // pred_check
          %p2785 = pneg %p246
        $region66: #{tpu_custom_call.1} parent=63 // pred_check_branch
          %2787 = sbr.rel (%p2785) target = $region68
        $region67: #{tpu_custom_call.1} parent=63 // pred_region
          %s2788 = sand.u32 %s231, 1
          %s2789 = scalar_lea.sflag [#allocation3], %s2788
          %s2790 = sand.u32 %s231, 1
          %s2791 = smul.addr %s2790, 64
          %s2792 = scalar_lea.vmem [#allocation2], %s2791
          %2793 = dma.done %s2789, 1024
        $region68: #{tpu_custom_call.1} parent=63 // pred_fallthru
          _
      $region64: #{tpu_custom_call.1} parent=5 // pred_fallthru
        _
    $region6: #{tpu_custom_call.1} parent=1 // loop_footer
      %s22 = sadd.s32 1, %s18
    $region7: #{tpu_custom_call.1} parent=1 // loop_footer_branch
      %17 = sbr.rel target = $region3
    $region8: #{tpu_custom_call.1} parent=1 // loop_exit
      _
    %2794 = vsyncpa [#allocation3], 1
    %s2795 = scalar_lea.sflag [#allocation3], 1
    %2796 = vsyncpa %s2795, 1

</llo_original>
